<compile_context>
chip_gen: v5e
topology: v5e:2x2
jax: 0.10.0
libtpu: 0.0.40
codegen_flags: <defaults>
</compile_context>

<pallas_src>
import functools

import jax
import jax.numpy as jnp
from jax.experimental import pallas as pl
from jax.experimental.pallas import tpu as pltpu

EPS = 1e-5  # nn.BatchNorm2d default eps


# ----------------------------------------------------------------------------
# Fused stack kernel.
# Layout: every activation is (channels, L); L = zero-padded B*(H+2)*(W+2)
# spatial flattened onto lanes (rounded up to a multiple of 128).  A 3x3 conv
# stacks its 9 lane-rolled taps on the sublane/contraction axis and issues one
# MXU matmul.  `m_ref` is 1 on valid interior pixels, 0 on halo/tail lanes: it
# restricts BN statistics to the true N*H*W pixels and zeroes the halo so it
# doubles as the zero padding of the next conv.
# ----------------------------------------------------------------------------
def _stack_kernel(*refs, block_channels, roll_amounts, inv_n):
    x_ref, m_ref = refs[0], refs[1]
    o_ref = refs[-1]
    w_refs = refs[2:-1]                      # 4 per block: w1, w2, gamma, beta

    mask = m_ref[...]                        # (1, L)    f32
    v = x_ref[...]                           # (Cin0, L) f32

    def conv3x3(act, w_ref):
        # Stack the 9 lane-shifted taps on the contraction axis and do ONE
        # bf16 MXU matmul (f32 accumulation): (Cout, 9*C) @ (9*C, L).
        taps = [act if a == 0 else pltpu.roll(act, shift=a, axis=1)
                for a in roll_amounts]
        slab = jnp.concatenate(taps, axis=0).astype(jnp.bfloat16)   # (9*C, L)
        return jnp.dot(w_ref[...], slab,
                       preferred_element_type=jnp.float32)          # (Cout, L)

    def bn_train(acc, gamma, beta):
        # Train-mode batch stats over valid pixels, folded into one
        # per-channel scale + shift (single mul + add over (Cout, L)).
        masked = acc * mask
        mean = jnp.sum(masked, axis=1, keepdims=True) * inv_n
        ex2 = jnp.sum(masked * acc, axis=1, keepdims=True) * inv_n
        var = ex2 - mean * mean              # biased variance (train mode)
        scale = gamma * jax.lax.rsqrt(var + EPS)
        shift = beta - mean * scale
        return acc * scale + shift

    idx = 0
    for cin, cout in block_channels:
        w1_ref, w2_ref, g_ref, b_ref = w_refs[idx:idx + 4]
        idx += 4
        gamma, beta = g_ref[...], b_ref[...]

        h = jnp.maximum(bn_train(conv3x3(v, w1_ref), gamma, beta), 0.0) * mask
        y = bn_train(conv3x3(h, w2_ref), gamma, beta)
        if cin == cout:
            y = y + v
        else:
            # channel-padded skip without a zero slab: add v to rows [0, cin).
            y = jnp.concatenate([y[:cin] + v, y[cin:]], axis=0)
        v = jnp.maximum(y, 0.0) * mask

    o_ref[...] = v.astype(o_ref.dtype)


# ----------------------------------------------------------------------------
# Layout glue (compiled into the same jit dispatch as the kernel).
# ----------------------------------------------------------------------------
def _round_up(n, m):
    return (n + m - 1) // m * m


def _nchw_to_flat(x_nchw, L):
    """NCHW -> (C, L): spatial zero-pad by 1, flatten B*(H+2)*(W+2) on lanes."""
    B, C, H, W = x_nchw.shape
    xt = jnp.pad(jnp.transpose(x_nchw, (1, 0, 2, 3)).astype(jnp.float32),
                 ((0, 0), (0, 0), (1, 1), (1, 1)))
    xf = xt.reshape(C, B * (H + 2) * (W + 2))
    return jnp.pad(xf, ((0, 0), (0, L - xf.shape[1])))


def _flat_to_nchw(y_flat, B, H, W):
    C = y_flat.shape[0]
    y = y_flat[:, :B * (H + 2) * (W + 2)].reshape(C, B, H + 2, W + 2)
    return jnp.transpose(y[:, :, 1:H + 1, 1:W + 1], (1, 0, 2, 3))


def _valid_mask(B, H, W, L):
    m = jnp.zeros((B, H + 2, W + 2), jnp.float32)
    m = m.at[:, 1:H + 1, 1:W + 1].set(1.0)
    m = m.reshape(1, B * (H + 2) * (W + 2))
    return jnp.pad(m, ((0, 0), (0, L - m.shape[1])))


def _prep_conv_weight(w):
    """PyTorch (Cout, Cin, 3, 3) -> (Cout, 9*Cin) bf16 (tap-major, channel-minor)."""
    cout, cin = int(w.shape[0]), int(w.shape[1])
    return (jnp.transpose(w, (0, 2, 3, 1))          # (Cout, ky, kx, Cin)
            .reshape(cout, 9 * cin).astype(jnp.bfloat16))


@jax.jit
def residual_stack(x_nchw, params):
    """ResidualStack forward (train-mode BN batch stats). NCHW in / NCHW out."""
    B, _, H, W = x_nchw.shape
    Wp = W + 2
    L = _round_up(B * (H + 2) * Wp, 128)

    # Tap (dy, dx) reads flat padded position m + (dy-1)*Wp + (dx-1).
    # pltpu.roll follows the jnp.roll convention out[m] = x[(m - shift) % L],
    # so shift by -offset.  The 1-pixel halo covers |offset| <= Wp+1 (no
    # cross-image leakage for interior pixels) and the mask zeroes halo/tail.
    roll_amounts = tuple((-((dy - 1) * Wp + (dx - 1))) % L
                         for dy in range(3) for dx in range(3))

    block_channels = tuple((int(p["w1"].shape[1]), int(p["w1"].shape[0]))
                           for p in params)
    cmax = max(c for pair in block_channels for c in pair)
    cout_last = block_channels[-1][1]

    weight_args = []
    for p in params:
        cout = int(p["w1"].shape[0])
        weight_args += [
            _prep_conv_weight(p["w1"]),
            _prep_conv_weight(p["w2"]),
            p["gamma"].reshape(cout, 1).astype(jnp.float32),
            p["beta"].reshape(cout, 1).astype(jnp.float32),
        ]

    kernel = functools.partial(
        _stack_kernel, block_channels=block_channels,
        roll_amounts=roll_amounts, inv_n=1.0 / float(B * H * W))

    # VMEM sized to actual need (tap slabs + a few (C, L) f32 temporaries)
    # with a 4x safety factor; well under v7x's 64 MiB per-core VMEM.
    est = (9 * cmax * L * (4 + 2)        # f32 + bf16 tap slabs
           + 12 * cmax * L * 4           # activation temporaries
           + (2 + cmax) * L * 4)         # resident input / mask / output
    vmem_limit = max(4 * 1024 * 1024, _round_up(4 * est, 1024 * 1024))

    vmem = pl.BlockSpec(memory_space=pltpu.MemorySpace.VMEM)
    y_flat = pl.pallas_call(
        kernel,
        out_shape=jax.ShapeDtypeStruct((cout_last, L), jnp.float32),
        in_specs=[vmem] * (2 + len(weight_args)),
        out_specs=vmem,
        compiler_params=pltpu.CompilerParams(vmem_limit_bytes=int(vmem_limit)),
    )(_nchw_to_flat(x_nchw, L), _valid_mask(B, H, W, L), *weight_args)

    return _flat_to_nchw(y_flat, B, H, W)


def init_residual_stack_params(key, in_channels, out_channels, num_blocks):
    # Mirrors ResidualStack.__init__: first block (in->out), plus at most ONE
    # extra block (out->out) when num_blocks > 1.
    specs = [(in_channels, out_channels)]
    if num_blocks > 1:
        specs.append((out_channels, out_channels))
    blocks = []
    for ic, oc in specs:
        key, k1, k2, k3, k4 = jax.random.split(key, 5)
        blocks.append(dict(
            w1=0.1 * jax.random.normal(k1, (oc, ic, 3, 3), jnp.float32),
            w2=0.1 * jax.random.normal(k2, (oc, oc, 3, 3), jnp.float32),
            gamma=1.0 + 0.1 * jax.random.normal(k3, (oc,), jnp.float32),
            beta=0.1 * jax.random.normal(k4, (oc,), jnp.float32),
        ))
    return blocks


# ----------------------------------------------------------------------------
# Pure-JAX references (correctness check only).
#   operand_dtype=bf16 -> matches kernel numerics (bf16 operands, f32 accum)
#   operand_dtype=f32  -> full-precision sanity bound
# ----------------------------------------------------------------------------
def _ref_conv(x, w, operand_dtype):
    return jax.lax.conv_general_dilated(
        x.astype(operand_dtype), w.astype(operand_dtype),
        window_strides=(1, 1), padding=((1, 1), (1, 1)),
        dimension_numbers=("NCHW", "OIHW", "NCHW"),
        preferred_element_type=jnp.float32)


def _ref_bn(h, gamma, beta):
    mean = jnp.mean(h, axis=(0, 2, 3), keepdims=True)
    var = jnp.mean(h * h, axis=(0, 2, 3), keepdims=True) - mean * mean
    return ((h - mean) * jax.lax.rsqrt(var + EPS)
            * gamma[None, :, None, None] + beta[None, :, None, None])


def _ref_block(x, w1, w2, gamma, beta, operand_dtype):
    out_c, in_c = w1.shape[0], w1.shape[1]
    r = jax.nn.relu(_ref_bn(_ref_conv(x, w1, operand_dtype), gamma, beta))
    r = _ref_bn(_ref_conv(r, w2, operand_dtype), gamma, beta)
    skip = x if in_c == out_c else jnp.pad(
        x, ((0, 0), (0, out_c - in_c), (0, 0), (0, 0)))
    return jax.nn.relu(r + skip)


def _ref_stack(x, params, operand_dtype):
    for p in params:
        x = _ref_block(x, p["w1"], p["w2"], p["gamma"], p["beta"], operand_dtype)
    return x


if __name__ == "__main__":
    key = jax.random.PRNGKey(0)
    kx, kp = jax.random.split(key)

    B, C_in, H, W = 2, 4, 16, 16
    C_out, num_blocks = 8, 2

    x = jax.random.normal(kx, (B, C_in, H, W), jnp.float32)
    params = init_residual_stack_params(kp, C_in, C_out, num_blocks)

    out = jax.block_until_ready(residual_stack(x, params))
    assert out.shape == (B, C_out, H, W), out.shape

    # Strict check vs the matched-precision reference (bf16 operands, f32
    # accumulation / BN -- same numerics as the kernel).
    ref_bf16 = jax.block_until_ready(_ref_stack(x, params, jnp.bfloat16))
    err_bf16 = float(jnp.max(jnp.abs(out - ref_bf16)))
    assert jnp.allclose(out, ref_bf16, atol=2e-3, rtol=2e-3), err_bf16

    # Loose sanity check vs the full-f32 reference (bounded bf16-operand drift).
    ref_f32 = jax.block_until_ready(_ref_stack(x, params, jnp.float32))
    err_f32 = float(jnp.max(jnp.abs(out - ref_f32)))
    assert jnp.allclose(out, ref_f32, atol=1.5e-1, rtol=1.5e-1), err_f32

    print("KERNEL_OK")
</pallas_src>

<mosaic_0001>
module attributes {stable_mosaic.version = 11 : i64} {
  func.func @_stack_kernel(%arg0: memref<4x768xf32, #tpu.memory_space<vmem>>, %arg1: memref<1x768xf32, #tpu.memory_space<vmem>>, %arg2: memref<8x36xbf16, #tpu.memory_space<vmem>>, %arg3: memref<8x72xbf16, #tpu.memory_space<vmem>>, %arg4: memref<8x1xf32, #tpu.memory_space<vmem>>, %arg5: memref<8x1xf32, #tpu.memory_space<vmem>>, %arg6: memref<8x72xbf16, #tpu.memory_space<vmem>>, %arg7: memref<8x72xbf16, #tpu.memory_space<vmem>>, %arg8: memref<8x1xf32, #tpu.memory_space<vmem>>, %arg9: memref<8x1xf32, #tpu.memory_space<vmem>>, %arg10: memref<8x768xf32, #tpu.memory_space<vmem>>) attributes {dimension_semantics = [], scalar_prefetch = 0 : i64, scratch_operands = 0 : i64, tpu.core_type = #tpu.core_type<tc>} {
    %c0 = arith.constant 0 : index
    %c0_0 = arith.constant 0 : index
    %0 = vector.load %arg1[%c0, %c0_0] : memref<1x768xf32, #tpu.memory_space<vmem>>, vector<1x768xf32>
    %c0_1 = arith.constant 0 : index
    %c0_2 = arith.constant 0 : index
    %1 = vector.load %arg0[%c0_1, %c0_2] : memref<4x768xf32, #tpu.memory_space<vmem>>, vector<4x768xf32>
    %c0_3 = arith.constant 0 : index
    %c0_4 = arith.constant 0 : index
    %2 = vector.load %arg4[%c0_3, %c0_4] : memref<8x1xf32, #tpu.memory_space<vmem>>, vector<8x1xf32>
    %c0_5 = arith.constant 0 : index
    %c0_6 = arith.constant 0 : index
    %3 = vector.load %arg5[%c0_5, %c0_6] : memref<8x1xf32, #tpu.memory_space<vmem>>, vector<8x1xf32>
    %c19_i32 = arith.constant 19 : i32
    %4 = tpu.dynamic_rotate %1 by %c19_i32 dim 1 : vector<4x768xf32>, i32 -> vector<4x768xf32>
    %c18_i32 = arith.constant 18 : i32
    %5 = tpu.dynamic_rotate %1 by %c18_i32 dim 1 : vector<4x768xf32>, i32 -> vector<4x768xf32>
    %c17_i32 = arith.constant 17 : i32
    %6 = tpu.dynamic_rotate %1 by %c17_i32 dim 1 : vector<4x768xf32>, i32 -> vector<4x768xf32>
    %c1_i32 = arith.constant 1 : i32
    %7 = tpu.dynamic_rotate %1 by %c1_i32 dim 1 : vector<4x768xf32>, i32 -> vector<4x768xf32>
    %c767_i32 = arith.constant 767 : i32
    %8 = tpu.dynamic_rotate %1 by %c767_i32 dim 1 : vector<4x768xf32>, i32 -> vector<4x768xf32>
    %c751_i32 = arith.constant 751 : i32
    %9 = tpu.dynamic_rotate %1 by %c751_i32 dim 1 : vector<4x768xf32>, i32 -> vector<4x768xf32>
    %c750_i32 = arith.constant 750 : i32
    %10 = tpu.dynamic_rotate %1 by %c750_i32 dim 1 : vector<4x768xf32>, i32 -> vector<4x768xf32>
    %c749_i32 = arith.constant 749 : i32
    %11 = tpu.dynamic_rotate %1 by %c749_i32 dim 1 : vector<4x768xf32>, i32 -> vector<4x768xf32>
    %12 = tpu.concatenate %4, %5, %6, %7, %1, %8, %9, %10, %11 in 0 : vector<4x768xf32>, vector<4x768xf32>, vector<4x768xf32>, vector<4x768xf32>, vector<4x768xf32>, vector<4x768xf32>, vector<4x768xf32>, vector<4x768xf32>, vector<4x768xf32> -> vector<36x768xf32>
    %13 = arith.truncf %12 : vector<36x768xf32> to vector<36x768xbf16>
    %c0_7 = arith.constant 0 : index
    %c0_8 = arith.constant 0 : index
    %14 = vector.load %arg2[%c0_7, %c0_8] : memref<8x36xbf16, #tpu.memory_space<vmem>>, vector<8x36xbf16>
    %cst = arith.constant dense<0.000000e+00> : vector<8x768xf32>
    %15 = tpu.matmul %14, %13, %cst {dimension_numbers = #tpu.dot_dimension_numbers<[1], [0], [0], [1], [0, 0, 1, 1], [], []>} : vector<8x36xbf16>, vector<36x768xbf16>, vector<8x768xf32> -> vector<8x768xf32>
    %16 = vector.broadcast %0 : vector<1x768xf32> to vector<8x768xf32>
    %17 = arith.mulf %15, %16 : vector<8x768xf32>
    %cst_9 = arith.constant dense<0.000000e+00> : vector<8xf32>
    %18 = vector.multi_reduction <add>, %17, %cst_9 [1] : vector<8x768xf32> to vector<8xf32>
    %19 = vector.shape_cast %18 : vector<8xf32> to vector<8x1xf32>
    %cst_10 = arith.constant 0.001953125 : f32
    %20 = vector.broadcast %cst_10 : f32 to vector<8x1xf32>
    %21 = arith.mulf %19, %20 : vector<8x1xf32>
    %22 = arith.mulf %17, %15 : vector<8x768xf32>
    %cst_11 = arith.constant dense<0.000000e+00> : vector<8xf32>
    %23 = vector.multi_reduction <add>, %22, %cst_11 [1] : vector<8x768xf32> to vector<8xf32>
    %24 = vector.shape_cast %23 : vector<8xf32> to vector<8x1xf32>
    %cst_12 = arith.constant 0.001953125 : f32
    %25 = vector.broadcast %cst_12 : f32 to vector<8x1xf32>
    %26 = arith.mulf %24, %25 : vector<8x1xf32>
    %27 = arith.mulf %21, %21 : vector<8x1xf32>
    %28 = arith.subf %26, %27 : vector<8x1xf32>
    %cst_13 = arith.constant 9.99999974E-6 : f32
    %29 = vector.broadcast %cst_13 : f32 to vector<8x1xf32>
    %30 = arith.addf %28, %29 : vector<8x1xf32>
    %31 = math.rsqrt %30 : vector<8x1xf32>
    %32 = arith.mulf %2, %31 : vector<8x1xf32>
    %33 = arith.mulf %21, %32 : vector<8x1xf32>
    %34 = arith.subf %3, %33 : vector<8x1xf32>
    %35 = vector.broadcast %32 : vector<8x1xf32> to vector<8x768xf32>
    %36 = arith.mulf %15, %35 : vector<8x768xf32>
    %37 = vector.broadcast %34 : vector<8x1xf32> to vector<8x768xf32>
    %38 = arith.addf %36, %37 : vector<8x768xf32>
    %cst_14 = arith.constant 0.000000e+00 : f32
    %39 = vector.broadcast %cst_14 : f32 to vector<8x768xf32>
    %40 = arith.maximumf %38, %39 : vector<8x768xf32>
    %41 = vector.broadcast %0 : vector<1x768xf32> to vector<8x768xf32>
    %42 = arith.mulf %40, %41 : vector<8x768xf32>
    %c19_i32_15 = arith.constant 19 : i32
    %43 = tpu.dynamic_rotate %42 by %c19_i32_15 dim 1 : vector<8x768xf32>, i32 -> vector<8x768xf32>
    %c18_i32_16 = arith.constant 18 : i32
    %44 = tpu.dynamic_rotate %42 by %c18_i32_16 dim 1 : vector<8x768xf32>, i32 -> vector<8x768xf32>
    %c17_i32_17 = arith.constant 17 : i32
    %45 = tpu.dynamic_rotate %42 by %c17_i32_17 dim 1 : vector<8x768xf32>, i32 -> vector<8x768xf32>
    %c1_i32_18 = arith.constant 1 : i32
    %46 = tpu.dynamic_rotate %42 by %c1_i32_18 dim 1 : vector<8x768xf32>, i32 -> vector<8x768xf32>
    %c767_i32_19 = arith.constant 767 : i32
    %47 = tpu.dynamic_rotate %42 by %c767_i32_19 dim 1 : vector<8x768xf32>, i32 -> vector<8x768xf32>
    %c751_i32_20 = arith.constant 751 : i32
    %48 = tpu.dynamic_rotate %42 by %c751_i32_20 dim 1 : vector<8x768xf32>, i32 -> vector<8x768xf32>
    %c750_i32_21 = arith.constant 750 : i32
    %49 = tpu.dynamic_rotate %42 by %c750_i32_21 dim 1 : vector<8x768xf32>, i32 -> vector<8x768xf32>
    %c749_i32_22 = arith.constant 749 : i32
    %50 = tpu.dynamic_rotate %42 by %c749_i32_22 dim 1 : vector<8x768xf32>, i32 -> vector<8x768xf32>
    %51 = tpu.concatenate %43, %44, %45, %46, %42, %47, %48, %49, %50 in 0 : vector<8x768xf32>, vector<8x768xf32>, vector<8x768xf32>, vector<8x768xf32>, vector<8x768xf32>, vector<8x768xf32>, vector<8x768xf32>, vector<8x768xf32>, vector<8x768xf32> -> vector<72x768xf32>
    %52 = arith.truncf %51 : vector<72x768xf32> to vector<72x768xbf16>
    %c0_23 = arith.constant 0 : index
    %c0_24 = arith.constant 0 : index
    %53 = vector.load %arg3[%c0_23, %c0_24] : memref<8x72xbf16, #tpu.memory_space<vmem>>, vector<8x72xbf16>
    %cst_25 = arith.constant dense<0.000000e+00> : vector<8x768xf32>
    %54 = tpu.matmul %53, %52, %cst_25 {dimension_numbers = #tpu.dot_dimension_numbers<[1], [0], [0], [1], [0, 0, 1, 1], [], []>} : vector<8x72xbf16>, vector<72x768xbf16>, vector<8x768xf32> -> vector<8x768xf32>
    %55 = vector.broadcast %0 : vector<1x768xf32> to vector<8x768xf32>
    %56 = arith.mulf %54, %55 : vector<8x768xf32>
    %cst_26 = arith.constant dense<0.000000e+00> : vector<8xf32>
    %57 = vector.multi_reduction <add>, %56, %cst_26 [1] : vector<8x768xf32> to vector<8xf32>
    %58 = vector.shape_cast %57 : vector<8xf32> to vector<8x1xf32>
    %cst_27 = arith.constant 0.001953125 : f32
    %59 = vector.broadcast %cst_27 : f32 to vector<8x1xf32>
    %60 = arith.mulf %58, %59 : vector<8x1xf32>
    %61 = arith.mulf %56, %54 : vector<8x768xf32>
    %cst_28 = arith.constant dense<0.000000e+00> : vector<8xf32>
    %62 = vector.multi_reduction <add>, %61, %cst_28 [1] : vector<8x768xf32> to vector<8xf32>
    %63 = vector.shape_cast %62 : vector<8xf32> to vector<8x1xf32>
    %cst_29 = arith.constant 0.001953125 : f32
    %64 = vector.broadcast %cst_29 : f32 to vector<8x1xf32>
    %65 = arith.mulf %63, %64 : vector<8x1xf32>
    %66 = arith.mulf %60, %60 : vector<8x1xf32>
    %67 = arith.subf %65, %66 : vector<8x1xf32>
    %cst_30 = arith.constant 9.99999974E-6 : f32
    %68 = vector.broadcast %cst_30 : f32 to vector<8x1xf32>
    %69 = arith.addf %67, %68 : vector<8x1xf32>
    %70 = math.rsqrt %69 : vector<8x1xf32>
    %71 = arith.mulf %2, %70 : vector<8x1xf32>
    %72 = arith.mulf %60, %71 : vector<8x1xf32>
    %73 = arith.subf %3, %72 : vector<8x1xf32>
    %74 = vector.broadcast %71 : vector<8x1xf32> to vector<8x768xf32>
    %75 = arith.mulf %54, %74 : vector<8x768xf32>
    %76 = vector.broadcast %73 : vector<8x1xf32> to vector<8x768xf32>
    %77 = arith.addf %75, %76 : vector<8x768xf32>
    %78 = vector.extract_strided_slice %77 {offsets = [0, 0], sizes = [4, 768], strides = [1, 1]} : vector<8x768xf32> to vector<4x768xf32>
    %79 = arith.addf %78, %1 : vector<4x768xf32>
    %80 = vector.extract_strided_slice %77 {offsets = [4, 0], sizes = [4, 768], strides = [1, 1]} : vector<8x768xf32> to vector<4x768xf32>
    %81 = tpu.concatenate %79, %80 in 0 : vector<4x768xf32>, vector<4x768xf32> -> vector<8x768xf32>
    %cst_31 = arith.constant 0.000000e+00 : f32
    %82 = vector.broadcast %cst_31 : f32 to vector<8x768xf32>
    %83 = arith.maximumf %81, %82 : vector<8x768xf32>
    %84 = vector.broadcast %0 : vector<1x768xf32> to vector<8x768xf32>
    %85 = arith.mulf %83, %84 : vector<8x768xf32>
    %c0_32 = arith.constant 0 : index
    %c0_33 = arith.constant 0 : index
    %86 = vector.load %arg8[%c0_32, %c0_33] : memref<8x1xf32, #tpu.memory_space<vmem>>, vector<8x1xf32>
    %c0_34 = arith.constant 0 : index
    %c0_35 = arith.constant 0 : index
    %87 = vector.load %arg9[%c0_34, %c0_35] : memref<8x1xf32, #tpu.memory_space<vmem>>, vector<8x1xf32>
    %c19_i32_36 = arith.constant 19 : i32
    %88 = tpu.dynamic_rotate %85 by %c19_i32_36 dim 1 : vector<8x768xf32>, i32 -> vector<8x768xf32>
    %c18_i32_37 = arith.constant 18 : i32
    %89 = tpu.dynamic_rotate %85 by %c18_i32_37 dim 1 : vector<8x768xf32>, i32 -> vector<8x768xf32>
    %c17_i32_38 = arith.constant 17 : i32
    %90 = tpu.dynamic_rotate %85 by %c17_i32_38 dim 1 : vector<8x768xf32>, i32 -> vector<8x768xf32>
    %c1_i32_39 = arith.constant 1 : i32
    %91 = tpu.dynamic_rotate %85 by %c1_i32_39 dim 1 : vector<8x768xf32>, i32 -> vector<8x768xf32>
    %c767_i32_40 = arith.constant 767 : i32
    %92 = tpu.dynamic_rotate %85 by %c767_i32_40 dim 1 : vector<8x768xf32>, i32 -> vector<8x768xf32>
    %c751_i32_41 = arith.constant 751 : i32
    %93 = tpu.dynamic_rotate %85 by %c751_i32_41 dim 1 : vector<8x768xf32>, i32 -> vector<8x768xf32>
    %c750_i32_42 = arith.constant 750 : i32
    %94 = tpu.dynamic_rotate %85 by %c750_i32_42 dim 1 : vector<8x768xf32>, i32 -> vector<8x768xf32>
    %c749_i32_43 = arith.constant 749 : i32
    %95 = tpu.dynamic_rotate %85 by %c749_i32_43 dim 1 : vector<8x768xf32>, i32 -> vector<8x768xf32>
    %96 = tpu.concatenate %88, %89, %90, %91, %85, %92, %93, %94, %95 in 0 : vector<8x768xf32>, vector<8x768xf32>, vector<8x768xf32>, vector<8x768xf32>, vector<8x768xf32>, vector<8x768xf32>, vector<8x768xf32>, vector<8x768xf32>, vector<8x768xf32> -> vector<72x768xf32>
    %97 = arith.truncf %96 : vector<72x768xf32> to vector<72x768xbf16>
    %c0_44 = arith.constant 0 : index
    %c0_45 = arith.constant 0 : index
    %98 = vector.load %arg6[%c0_44, %c0_45] : memref<8x72xbf16, #tpu.memory_space<vmem>>, vector<8x72xbf16>
    %cst_46 = arith.constant dense<0.000000e+00> : vector<8x768xf32>
    %99 = tpu.matmul %98, %97, %cst_46 {dimension_numbers = #tpu.dot_dimension_numbers<[1], [0], [0], [1], [0, 0, 1, 1], [], []>} : vector<8x72xbf16>, vector<72x768xbf16>, vector<8x768xf32> -> vector<8x768xf32>
    %100 = vector.broadcast %0 : vector<1x768xf32> to vector<8x768xf32>
    %101 = arith.mulf %99, %100 : vector<8x768xf32>
    %cst_47 = arith.constant dense<0.000000e+00> : vector<8xf32>
    %102 = vector.multi_reduction <add>, %101, %cst_47 [1] : vector<8x768xf32> to vector<8xf32>
    %103 = vector.shape_cast %102 : vector<8xf32> to vector<8x1xf32>
    %cst_48 = arith.constant 0.001953125 : f32
    %104 = vector.broadcast %cst_48 : f32 to vector<8x1xf32>
    %105 = arith.mulf %103, %104 : vector<8x1xf32>
    %106 = arith.mulf %101, %99 : vector<8x768xf32>
    %cst_49 = arith.constant dense<0.000000e+00> : vector<8xf32>
    %107 = vector.multi_reduction <add>, %106, %cst_49 [1] : vector<8x768xf32> to vector<8xf32>
    %108 = vector.shape_cast %107 : vector<8xf32> to vector<8x1xf32>
    %cst_50 = arith.constant 0.001953125 : f32
    %109 = vector.broadcast %cst_50 : f32 to vector<8x1xf32>
    %110 = arith.mulf %108, %109 : vector<8x1xf32>
    %111 = arith.mulf %105, %105 : vector<8x1xf32>
    %112 = arith.subf %110, %111 : vector<8x1xf32>
    %cst_51 = arith.constant 9.99999974E-6 : f32
    %113 = vector.broadcast %cst_51 : f32 to vector<8x1xf32>
    %114 = arith.addf %112, %113 : vector<8x1xf32>
    %115 = math.rsqrt %114 : vector<8x1xf32>
    %116 = arith.mulf %86, %115 : vector<8x1xf32>
    %117 = arith.mulf %105, %116 : vector<8x1xf32>
    %118 = arith.subf %87, %117 : vector<8x1xf32>
    %119 = vector.broadcast %116 : vector<8x1xf32> to vector<8x768xf32>
    %120 = arith.mulf %99, %119 : vector<8x768xf32>
    %121 = vector.broadcast %118 : vector<8x1xf32> to vector<8x768xf32>
    %122 = arith.addf %120, %121 : vector<8x768xf32>
    %cst_52 = arith.constant 0.000000e+00 : f32
    %123 = vector.broadcast %cst_52 : f32 to vector<8x768xf32>
    %124 = arith.maximumf %122, %123 : vector<8x768xf32>
    %125 = vector.broadcast %0 : vector<1x768xf32> to vector<8x768xf32>
    %126 = arith.mulf %124, %125 : vector<8x768xf32>
    %c19_i32_53 = arith.constant 19 : i32
    %127 = tpu.dynamic_rotate %126 by %c19_i32_53 dim 1 : vector<8x768xf32>, i32 -> vector<8x768xf32>
    %c18_i32_54 = arith.constant 18 : i32
    %128 = tpu.dynamic_rotate %126 by %c18_i32_54 dim 1 : vector<8x768xf32>, i32 -> vector<8x768xf32>
    %c17_i32_55 = arith.constant 17 : i32
    %129 = tpu.dynamic_rotate %126 by %c17_i32_55 dim 1 : vector<8x768xf32>, i32 -> vector<8x768xf32>
    %c1_i32_56 = arith.constant 1 : i32
    %130 = tpu.dynamic_rotate %126 by %c1_i32_56 dim 1 : vector<8x768xf32>, i32 -> vector<8x768xf32>
    %c767_i32_57 = arith.constant 767 : i32
    %131 = tpu.dynamic_rotate %126 by %c767_i32_57 dim 1 : vector<8x768xf32>, i32 -> vector<8x768xf32>
    %c751_i32_58 = arith.constant 751 : i32
    %132 = tpu.dynamic_rotate %126 by %c751_i32_58 dim 1 : vector<8x768xf32>, i32 -> vector<8x768xf32>
    %c750_i32_59 = arith.constant 750 : i32
    %133 = tpu.dynamic_rotate %126 by %c750_i32_59 dim 1 : vector<8x768xf32>, i32 -> vector<8x768xf32>
    %c749_i32_60 = arith.constant 749 : i32
    %134 = tpu.dynamic_rotate %126 by %c749_i32_60 dim 1 : vector<8x768xf32>, i32 -> vector<8x768xf32>
    %135 = tpu.concatenate %127, %128, %129, %130, %126, %131, %132, %133, %134 in 0 : vector<8x768xf32>, vector<8x768xf32>, vector<8x768xf32>, vector<8x768xf32>, vector<8x768xf32>, vector<8x768xf32>, vector<8x768xf32>, vector<8x768xf32>, vector<8x768xf32> -> vector<72x768xf32>
    %136 = arith.truncf %135 : vector<72x768xf32> to vector<72x768xbf16>
    %c0_61 = arith.constant 0 : index
    %c0_62 = arith.constant 0 : index
    %137 = vector.load %arg7[%c0_61, %c0_62] : memref<8x72xbf16, #tpu.memory_space<vmem>>, vector<8x72xbf16>
    %cst_63 = arith.constant dense<0.000000e+00> : vector<8x768xf32>
    %138 = tpu.matmul %137, %136, %cst_63 {dimension_numbers = #tpu.dot_dimension_numbers<[1], [0], [0], [1], [0, 0, 1, 1], [], []>} : vector<8x72xbf16>, vector<72x768xbf16>, vector<8x768xf32> -> vector<8x768xf32>
    %139 = vector.broadcast %0 : vector<1x768xf32> to vector<8x768xf32>
    %140 = arith.mulf %138, %139 : vector<8x768xf32>
    %cst_64 = arith.constant dense<0.000000e+00> : vector<8xf32>
    %141 = vector.multi_reduction <add>, %140, %cst_64 [1] : vector<8x768xf32> to vector<8xf32>
    %142 = vector.shape_cast %141 : vector<8xf32> to vector<8x1xf32>
    %cst_65 = arith.constant 0.001953125 : f32
    %143 = vector.broadcast %cst_65 : f32 to vector<8x1xf32>
    %144 = arith.mulf %142, %143 : vector<8x1xf32>
    %145 = arith.mulf %140, %138 : vector<8x768xf32>
    %cst_66 = arith.constant dense<0.000000e+00> : vector<8xf32>
    %146 = vector.multi_reduction <add>, %145, %cst_66 [1] : vector<8x768xf32> to vector<8xf32>
    %147 = vector.shape_cast %146 : vector<8xf32> to vector<8x1xf32>
    %cst_67 = arith.constant 0.001953125 : f32
    %148 = vector.broadcast %cst_67 : f32 to vector<8x1xf32>
    %149 = arith.mulf %147, %148 : vector<8x1xf32>
    %150 = arith.mulf %144, %144 : vector<8x1xf32>
    %151 = arith.subf %149, %150 : vector<8x1xf32>
    %cst_68 = arith.constant 9.99999974E-6 : f32
    %152 = vector.broadcast %cst_68 : f32 to vector<8x1xf32>
    %153 = arith.addf %151, %152 : vector<8x1xf32>
    %154 = math.rsqrt %153 : vector<8x1xf32>
    %155 = arith.mulf %86, %154 : vector<8x1xf32>
    %156 = arith.mulf %144, %155 : vector<8x1xf32>
    %157 = arith.subf %87, %156 : vector<8x1xf32>
    %158 = vector.broadcast %155 : vector<8x1xf32> to vector<8x768xf32>
    %159 = arith.mulf %138, %158 : vector<8x768xf32>
    %160 = vector.broadcast %157 : vector<8x1xf32> to vector<8x768xf32>
    %161 = arith.addf %159, %160 : vector<8x768xf32>
    %162 = arith.addf %161, %85 : vector<8x768xf32>
    %cst_69 = arith.constant 0.000000e+00 : f32
    %163 = vector.broadcast %cst_69 : f32 to vector<8x768xf32>
    %164 = arith.maximumf %162, %163 : vector<8x768xf32>
    %165 = vector.broadcast %0 : vector<1x768xf32> to vector<8x768xf32>
    %166 = arith.mulf %164, %165 : vector<8x768xf32>
    %c0_70 = arith.constant 0 : index
    %c0_71 = arith.constant 0 : index
    %167 = vector.load %arg10[%c0_70, %c0_71] : memref<8x768xf32, #tpu.memory_space<vmem>>, vector<8x768xf32>
    tpu.vector_store %arg10[%c0_70, %c0_71], %166 {strides = array<i32>} : memref<8x768xf32, #tpu.memory_space<vmem>>, vector<8x768xf32>,
    return
  }
}

</mosaic_0001>

<llo_original>
// kernel: residual_stack.1
$region0: #{residual_stack.1}
  #allocation0 [shape = 'u32[]', space=smem, size = 0x4, offset = 0x4, fixed_abs, tag = 'smem constant byte address 0x4 - core index']
  #allocation1 [shape = 'u32[72,128]{1,0:T(1,128)}', space=vmem, size = 0x9000, scoped, tag = 'internal scratch']
  %s0 = inlined_call_operand.vmem [shape: f32[4,768], index: 0, kind: input, shape index: {}]
  %s1 = inlined_call_operand.vmem [shape: f32[1,768], index: 1, kind: input, shape index: {}]
  %s2 = inlined_call_operand.vmem [shape: bf16[8,36], index: 2, kind: input, shape index: {}]
  %s3 = inlined_call_operand.vmem [shape: bf16[8,72], index: 3, kind: input, shape index: {}]
  %s4 = inlined_call_operand.vmem [shape: f32[8,1], index: 4, kind: input, shape index: {}]
  %s5 = inlined_call_operand.vmem [shape: f32[8,1], index: 5, kind: input, shape index: {}]
  %s6 = inlined_call_operand.vmem [shape: bf16[8,72], index: 6, kind: input, shape index: {}]
  %s7 = inlined_call_operand.vmem [shape: bf16[8,72], index: 7, kind: input, shape index: {}]
  %s8 = inlined_call_operand.vmem [shape: f32[8,1], index: 8, kind: input, shape index: {}]
  %s9 = inlined_call_operand.vmem [shape: f32[8,1], index: 9, kind: input, shape index: {}]
  %s10 = inlined_call_operand.vmem [shape: f32[8,768], index: 10, kind: output, shape index: {}]
  %s11 = sld [smem:[#allocation0]]
  $region50: #{residual_stack.1} parent=0
    _
  %s13 = ssub.s32 1, %s11
  %s14 = scalar_select 0, %s13, %s11
  // Predicated region
  $region2: #{residual_stack.1} parent=0 // pred_check
    _
  $region3: #{residual_stack.1} parent=0 // pred_check_branch
    %16 = sbr.rel (0) target = $region5
  $region4: #{residual_stack.1} parent=0 // pred_region
    _
  $region5: #{residual_stack.1} parent=0 // pred_fallthru
    _
  // Predicated region
  $region6: #{residual_stack.1} parent=0 // pred_check
    _
  $region7: #{residual_stack.1} parent=0 // pred_check_branch
    %18 = sbr.rel (0) target = $region9
  $region8: #{residual_stack.1} parent=0 // pred_region
    _
  $region9: #{residual_stack.1} parent=0 // pred_fallthru
    _
  // Predicated region
  $region10: #{residual_stack.1} parent=0 // pred_check
    _
  $region11: #{residual_stack.1} parent=0 // pred_check_branch
    %20 = sbr.rel (0) target = $region13
  $region12: #{residual_stack.1} parent=0 // pred_region
    _
  $region13: #{residual_stack.1} parent=0 // pred_fallthru
    _
  // Predicated region
  $region14: #{residual_stack.1} parent=0 // pred_check
    _
  $region15: #{residual_stack.1} parent=0 // pred_check_branch
    %22 = sbr.rel (0) target = $region17
  $region16: #{residual_stack.1} parent=0 // pred_region
    _
  $region17: #{residual_stack.1} parent=0 // pred_fallthru
    _
  // Predicated region
  $region18: #{residual_stack.1} parent=0 // pred_check
    _
  $region19: #{residual_stack.1} parent=0 // pred_check_branch
    %24 = sbr.rel (0) target = $region21
  $region20: #{residual_stack.1} parent=0 // pred_region
    _
  $region21: #{residual_stack.1} parent=0 // pred_fallthru
    _
  // Predicated region
  $region22: #{residual_stack.1} parent=0 // pred_check
    _
  $region23: #{residual_stack.1} parent=0 // pred_check_branch
    %26 = sbr.rel (0) target = $region25
  $region24: #{residual_stack.1} parent=0 // pred_region
    _
  $region25: #{residual_stack.1} parent=0 // pred_fallthru
    _
  // Predicated region
  $region26: #{residual_stack.1} parent=0 // pred_check
    _
  $region27: #{residual_stack.1} parent=0 // pred_check_branch
    %28 = sbr.rel (0) target = $region29
  $region28: #{residual_stack.1} parent=0 // pred_region
    _
  $region29: #{residual_stack.1} parent=0 // pred_fallthru
    _
  // Predicated region
  $region30: #{residual_stack.1} parent=0 // pred_check
    _
  $region31: #{residual_stack.1} parent=0 // pred_check_branch
    %30 = sbr.rel (0) target = $region33
  $region32: #{residual_stack.1} parent=0 // pred_region
    _
  $region33: #{residual_stack.1} parent=0 // pred_fallthru
    _
  // Predicated region
  $region34: #{residual_stack.1} parent=0 // pred_check
    _
  $region35: #{residual_stack.1} parent=0 // pred_check_branch
    %32 = sbr.rel (0) target = $region37
  $region36: #{residual_stack.1} parent=0 // pred_region
    _
  $region37: #{residual_stack.1} parent=0 // pred_fallthru
    _
  // Predicated region
  $region38: #{residual_stack.1} parent=0 // pred_check
    _
  $region39: #{residual_stack.1} parent=0 // pred_check_branch
    %34 = sbr.rel (0) target = $region41
  $region40: #{residual_stack.1} parent=0 // pred_region
    _
  $region41: #{residual_stack.1} parent=0 // pred_fallthru
    _
  %v36 = vld [vmem:[%s1] sm:$0x3f]
  %v37 = vld [vmem:[%s0] sm:$0xff]
  %v38 = vld [vmem:[%s0 + $0x8] sm:$0xff]
  %v39 = vld [vmem:[%s0 + $0x10] sm:$0xff]
  %v40 = vld [vmem:[%s4] sm:$0xff]
  %v41 = vld [vmem:[%s5] sm:$0xff]
  %45 = vst [vmem:[#allocation1] ss:$2 sm:$0xff] %v37
  %s46 = scalar_lea.vmem [#allocation1], 16
  %47 = vst [vmem:[%s46] ss:$2 sm:$0xff] %v38
  %s48 = scalar_lea.vmem [#allocation1], 32
  %49 = vst [vmem:[%s48] ss:$2 sm:$0xff] %v39
  %v50 = vld.sshfl [vmem:[#allocation1] sm:$0xff pattern:$0x75316420]
  %v51 = vld.sshfl [vmem:[#allocation1 + $0x8] sm:$0xff pattern:$0x75316420]
  %v52 = vld.sshfl [vmem:[#allocation1 + $0x10] sm:$0xff pattern:$0x75316420]
  %v53 = vld.sshfl [vmem:[#allocation1 + $0x18] sm:$0xff pattern:$0x75316420]
  %v54 = vld.sshfl [vmem:[#allocation1 + $0x20] sm:$0xff pattern:$0x75316420]
  %v55 = vld.sshfl [vmem:[#allocation1 + $0x28] sm:$0xff pattern:$0x75316420]
  %62 = vrot.lane.b32.xlu0 %v50, 19
  %v63 = vpop.permute.xlu0 %62
  %64 = vrot.lane.b32.xlu0 %v51, 19
  %v65 = vpop.permute.xlu0 %64
  %66 = vrot.lane.b32.xlu0 %v52, 19
  %v67 = vpop.permute.xlu0 %66
  %68 = vrot.lane.b32.xlu0 %v53, 19
  %v69 = vpop.permute.xlu0 %68
  %70 = vrot.lane.b32.xlu0 %v54, 19
  %v71 = vpop.permute.xlu0 %70
  %72 = vrot.lane.b32.xlu0 %v55, 19
  %v73 = vpop.permute.xlu0 %72
  %v74 = vlaneseq
  %v75 = vand.u32 %v74, 127
  %vm76 = vcmp.lt.s32.totalorder %v75, 19
  %v77 = vsel %vm76, %v71, %v73
  %v78 = vsel %vm76, %v69, %v71
  %v79 = vsel %vm76, %v67, %v69
  %v80 = vsel %vm76, %v65, %v67
  %v81 = vsel %vm76, %v63, %v65
  %v82 = vsel %vm76, %v73, %v63
  %83 = vst [vmem:[#allocation1] ss:$2 sm:$0xff] %v37
  %s84 = scalar_lea.vmem [#allocation1], 16
  %85 = vst [vmem:[%s84] ss:$2 sm:$0xff] %v38
  %s86 = scalar_lea.vmem [#allocation1], 32
  %87 = vst [vmem:[%s86] ss:$2 sm:$0xff] %v39
  %v88 = vld.sshfl [vmem:[#allocation1] sm:$0xff pattern:$0x75316420]
  %v89 = vld.sshfl [vmem:[#allocation1 + $0x8] sm:$0xff pattern:$0x75316420]
  %v90 = vld.sshfl [vmem:[#allocation1 + $0x10] sm:$0xff pattern:$0x75316420]
  %v91 = vld.sshfl [vmem:[#allocation1 + $0x18] sm:$0xff pattern:$0x75316420]
  %v92 = vld.sshfl [vmem:[#allocation1 + $0x20] sm:$0xff pattern:$0x75316420]
  %v93 = vld.sshfl [vmem:[#allocation1 + $0x28] sm:$0xff pattern:$0x75316420]
  %100 = vrot.lane.b32.xlu0 %v88, 18
  %v101 = vpop.permute.xlu0 %100
  %102 = vrot.lane.b32.xlu0 %v89, 18
  %v103 = vpop.permute.xlu0 %102
  %104 = vrot.lane.b32.xlu0 %v90, 18
  %v105 = vpop.permute.xlu0 %104
  %106 = vrot.lane.b32.xlu0 %v91, 18
  %v107 = vpop.permute.xlu0 %106
  %108 = vrot.lane.b32.xlu0 %v92, 18
  %v109 = vpop.permute.xlu0 %108
  %110 = vrot.lane.b32.xlu0 %v93, 18
  %v111 = vpop.permute.xlu0 %110
  %vm112 = vcmp.lt.s32.totalorder %v75, 18
  %v113 = vsel %vm112, %v109, %v111
  %v114 = vsel %vm112, %v107, %v109
  %v115 = vsel %vm112, %v105, %v107
  %v116 = vsel %vm112, %v103, %v105
  %v117 = vsel %vm112, %v101, %v103
  %v118 = vsel %vm112, %v111, %v101
  %119 = vst [vmem:[#allocation1] ss:$2 sm:$0xff] %v37
  %s120 = scalar_lea.vmem [#allocation1], 16
  %121 = vst [vmem:[%s120] ss:$2 sm:$0xff] %v38
  %s122 = scalar_lea.vmem [#allocation1], 32
  %123 = vst [vmem:[%s122] ss:$2 sm:$0xff] %v39
  %v124 = vld.sshfl [vmem:[#allocation1] sm:$0xff pattern:$0x75316420]
  %v125 = vld.sshfl [vmem:[#allocation1 + $0x8] sm:$0xff pattern:$0x75316420]
  %v126 = vld.sshfl [vmem:[#allocation1 + $0x10] sm:$0xff pattern:$0x75316420]
  %v127 = vld.sshfl [vmem:[#allocation1 + $0x18] sm:$0xff pattern:$0x75316420]
  %v128 = vld.sshfl [vmem:[#allocation1 + $0x20] sm:$0xff pattern:$0x75316420]
  %v129 = vld.sshfl [vmem:[#allocation1 + $0x28] sm:$0xff pattern:$0x75316420]
  %136 = vrot.lane.b32.xlu0 %v124, 17
  %v137 = vpop.permute.xlu0 %136
  %138 = vrot.lane.b32.xlu0 %v125, 17
  %v139 = vpop.permute.xlu0 %138
  %140 = vrot.lane.b32.xlu0 %v126, 17
  %v141 = vpop.permute.xlu0 %140
  %142 = vrot.lane.b32.xlu0 %v127, 17
  %v143 = vpop.permute.xlu0 %142
  %144 = vrot.lane.b32.xlu0 %v128, 17
  %v145 = vpop.permute.xlu0 %144
  %146 = vrot.lane.b32.xlu0 %v129, 17
  %v147 = vpop.permute.xlu0 %146
  %vm148 = vcmp.lt.s32.totalorder %v75, 17
  %v149 = vsel %vm148, %v145, %v147
  %v150 = vsel %vm148, %v143, %v145
  %v151 = vsel %vm148, %v141, %v143
  %v152 = vsel %vm148, %v139, %v141
  %v153 = vsel %vm148, %v137, %v139
  %v154 = vsel %vm148, %v147, %v137
  %155 = vst [vmem:[#allocation1] ss:$2 sm:$0xff] %v37
  %s156 = scalar_lea.vmem [#allocation1], 16
  %157 = vst [vmem:[%s156] ss:$2 sm:$0xff] %v38
  %s158 = scalar_lea.vmem [#allocation1], 32
  %159 = vst [vmem:[%s158] ss:$2 sm:$0xff] %v39
  %v160 = vld.sshfl [vmem:[#allocation1] sm:$0xff pattern:$0x75316420]
  %v161 = vld.sshfl [vmem:[#allocation1 + $0x8] sm:$0xff pattern:$0x75316420]
  %v162 = vld.sshfl [vmem:[#allocation1 + $0x10] sm:$0xff pattern:$0x75316420]
  %v163 = vld.sshfl [vmem:[#allocation1 + $0x18] sm:$0xff pattern:$0x75316420]
  %v164 = vld.sshfl [vmem:[#allocation1 + $0x20] sm:$0xff pattern:$0x75316420]
  %v165 = vld.sshfl [vmem:[#allocation1 + $0x28] sm:$0xff pattern:$0x75316420]
  %172 = vrot.lane.b32.xlu0 %v160, 1
  %v173 = vpop.permute.xlu0 %172
  %174 = vrot.lane.b32.xlu0 %v161, 1
  %v175 = vpop.permute.xlu0 %174
  %176 = vrot.lane.b32.xlu0 %v162, 1
  %v177 = vpop.permute.xlu0 %176
  %178 = vrot.lane.b32.xlu0 %v163, 1
  %v179 = vpop.permute.xlu0 %178
  %180 = vrot.lane.b32.xlu0 %v164, 1
  %v181 = vpop.permute.xlu0 %180
  %182 = vrot.lane.b32.xlu0 %v165, 1
  %v183 = vpop.permute.xlu0 %182
  %vm184 = vcmp.lt.s32.totalorder %v75, 1
  %v185 = vsel %vm184, %v181, %v183
  %v186 = vsel %vm184, %v179, %v181
  %v187 = vsel %vm184, %v177, %v179
  %v188 = vsel %vm184, %v175, %v177
  %v189 = vsel %vm184, %v173, %v175
  %v190 = vsel %vm184, %v183, %v173
  %191 = vst [vmem:[#allocation1] ss:$2 sm:$0xff] %v37
  %s192 = scalar_lea.vmem [#allocation1], 16
  %193 = vst [vmem:[%s192] ss:$2 sm:$0xff] %v38
  %s194 = scalar_lea.vmem [#allocation1], 32
  %195 = vst [vmem:[%s194] ss:$2 sm:$0xff] %v39
  %v196 = vld.sshfl [vmem:[#allocation1] sm:$0xff pattern:$0x75316420]
  %v197 = vld.sshfl [vmem:[#allocation1 + $0x8] sm:$0xff pattern:$0x75316420]
  %v198 = vld.sshfl [vmem:[#allocation1 + $0x10] sm:$0xff pattern:$0x75316420]
  %v199 = vld.sshfl [vmem:[#allocation1 + $0x18] sm:$0xff pattern:$0x75316420]
  %v200 = vld.sshfl [vmem:[#allocation1 + $0x20] sm:$0xff pattern:$0x75316420]
  %v201 = vld.sshfl [vmem:[#allocation1 + $0x28] sm:$0xff pattern:$0x75316420]
  %208 = vrot.lane.b32.xlu0 %v196, 127
  %v209 = vpop.permute.xlu0 %208
  %210 = vrot.lane.b32.xlu0 %v197, 127
  %v211 = vpop.permute.xlu0 %210
  %212 = vrot.lane.b32.xlu0 %v198, 127
  %v213 = vpop.permute.xlu0 %212
  %214 = vrot.lane.b32.xlu0 %v199, 127
  %v215 = vpop.permute.xlu0 %214
  %216 = vrot.lane.b32.xlu0 %v200, 127
  %v217 = vpop.permute.xlu0 %216
  %218 = vrot.lane.b32.xlu0 %v201, 127
  %v219 = vpop.permute.xlu0 %218
  %vm220 = vcmp.lt.s32.totalorder %v75, 127
  %v221 = vsel %vm220, %v217, %v219
  %v222 = vsel %vm220, %v215, %v217
  %v223 = vsel %vm220, %v213, %v215
  %v224 = vsel %vm220, %v211, %v213
  %v225 = vsel %vm220, %v209, %v211
  %v226 = vsel %vm220, %v219, %v209
  %227 = vst [vmem:[#allocation1] ss:$2 sm:$0xff] %v37
  %s228 = scalar_lea.vmem [#allocation1], 16
  %229 = vst [vmem:[%s228] ss:$2 sm:$0xff] %v38
  %s230 = scalar_lea.vmem [#allocation1], 32
  %231 = vst [vmem:[%s230] ss:$2 sm:$0xff] %v39
  %v232 = vld.sshfl [vmem:[#allocation1] sm:$0xff pattern:$0x75316420]
  %v233 = vld.sshfl [vmem:[#allocation1 + $0x8] sm:$0xff pattern:$0x75316420]
  %v234 = vld.sshfl [vmem:[#allocation1 + $0x10] sm:$0xff pattern:$0x75316420]
  %v235 = vld.sshfl [vmem:[#allocation1 + $0x18] sm:$0xff pattern:$0x75316420]
  %v236 = vld.sshfl [vmem:[#allocation1 + $0x20] sm:$0xff pattern:$0x75316420]
  %v237 = vld.sshfl [vmem:[#allocation1 + $0x28] sm:$0xff pattern:$0x75316420]
  %244 = vrot.lane.b32.xlu0 %v232, 111
  %v245 = vpop.permute.xlu0 %244
  %246 = vrot.lane.b32.xlu0 %v233, 111
  %v247 = vpop.permute.xlu0 %246
  %248 = vrot.lane.b32.xlu0 %v234, 111
  %v249 = vpop.permute.xlu0 %248
  %250 = vrot.lane.b32.xlu0 %v235, 111
  %v251 = vpop.permute.xlu0 %250
  %252 = vrot.lane.b32.xlu0 %v236, 111
  %v253 = vpop.permute.xlu0 %252
  %254 = vrot.lane.b32.xlu0 %v237, 111
  %v255 = vpop.permute.xlu0 %254
  %vm256 = vcmp.lt.s32.totalorder %v75, 111
  %v257 = vsel %vm256, %v253, %v255
  %v258 = vsel %vm256, %v251, %v253
  %v259 = vsel %vm256, %v249, %v251
  %v260 = vsel %vm256, %v247, %v249
  %v261 = vsel %vm256, %v245, %v247
  %v262 = vsel %vm256, %v255, %v245
  %263 = vst [vmem:[#allocation1] ss:$2 sm:$0xff] %v37
  %s264 = scalar_lea.vmem [#allocation1], 16
  %265 = vst [vmem:[%s264] ss:$2 sm:$0xff] %v38
  %s266 = scalar_lea.vmem [#allocation1], 32
  %267 = vst [vmem:[%s266] ss:$2 sm:$0xff] %v39
  %v268 = vld.sshfl [vmem:[#allocation1] sm:$0xff pattern:$0x75316420]
  %v269 = vld.sshfl [vmem:[#allocation1 + $0x8] sm:$0xff pattern:$0x75316420]
  %v270 = vld.sshfl [vmem:[#allocation1 + $0x10] sm:$0xff pattern:$0x75316420]
  %v271 = vld.sshfl [vmem:[#allocation1 + $0x18] sm:$0xff pattern:$0x75316420]
  %v272 = vld.sshfl [vmem:[#allocation1 + $0x20] sm:$0xff pattern:$0x75316420]
  %v273 = vld.sshfl [vmem:[#allocation1 + $0x28] sm:$0xff pattern:$0x75316420]
  %280 = vrot.lane.b32.xlu0 %v268, 110
  %v281 = vpop.permute.xlu0 %280
  %282 = vrot.lane.b32.xlu0 %v269, 110
  %v283 = vpop.permute.xlu0 %282
  %284 = vrot.lane.b32.xlu0 %v270, 110
  %v285 = vpop.permute.xlu0 %284
  %286 = vrot.lane.b32.xlu0 %v271, 110
  %v287 = vpop.permute.xlu0 %286
  %288 = vrot.lane.b32.xlu0 %v272, 110
  %v289 = vpop.permute.xlu0 %288
  %290 = vrot.lane.b32.xlu0 %v273, 110
  %v291 = vpop.permute.xlu0 %290
  %vm292 = vcmp.lt.s32.totalorder %v75, 110
  %v293 = vsel %vm292, %v289, %v291
  %v294 = vsel %vm292, %v287, %v289
  %v295 = vsel %vm292, %v285, %v287
  %v296 = vsel %vm292, %v283, %v285
  %v297 = vsel %vm292, %v281, %v283
  %v298 = vsel %vm292, %v291, %v281
  %299 = vst [vmem:[#allocation1] ss:$2 sm:$0xff] %v37
  %s300 = scalar_lea.vmem [#allocation1], 16
  %301 = vst [vmem:[%s300] ss:$2 sm:$0xff] %v38
  %s302 = scalar_lea.vmem [#allocation1], 32
  %303 = vst [vmem:[%s302] ss:$2 sm:$0xff] %v39
  %v304 = vld.sshfl [vmem:[#allocation1] sm:$0xff pattern:$0x75316420]
  %v305 = vld.sshfl [vmem:[#allocation1 + $0x8] sm:$0xff pattern:$0x75316420]
  %v306 = vld.sshfl [vmem:[#allocation1 + $0x10] sm:$0xff pattern:$0x75316420]
  %v307 = vld.sshfl [vmem:[#allocation1 + $0x18] sm:$0xff pattern:$0x75316420]
  %v308 = vld.sshfl [vmem:[#allocation1 + $0x20] sm:$0xff pattern:$0x75316420]
  %v309 = vld.sshfl [vmem:[#allocation1 + $0x28] sm:$0xff pattern:$0x75316420]
  %316 = vrot.lane.b32.xlu0 %v304, 109
  %v317 = vpop.permute.xlu0 %316
  %318 = vrot.lane.b32.xlu0 %v305, 109
  %v319 = vpop.permute.xlu0 %318
  %320 = vrot.lane.b32.xlu0 %v306, 109
  %v321 = vpop.permute.xlu0 %320
  %322 = vrot.lane.b32.xlu0 %v307, 109
  %v323 = vpop.permute.xlu0 %322
  %324 = vrot.lane.b32.xlu0 %v308, 109
  %v325 = vpop.permute.xlu0 %324
  %326 = vrot.lane.b32.xlu0 %v309, 109
  %v327 = vpop.permute.xlu0 %326
  %vm328 = vcmp.lt.s32.totalorder %v75, 109
  %v329 = vsel %vm328, %v325, %v327
  %v330 = vsel %vm328, %v323, %v325
  %v331 = vsel %vm328, %v321, %v323
  %v332 = vsel %vm328, %v319, %v321
  %v333 = vsel %vm328, %v317, %v319
  %v334 = vsel %vm328, %v327, %v317
  %v341 = vrot.slane %v118, 4
  %v342 = vrot.slane %v117, 4
  %v343 = vrot.slane %v116, 4
  %v344 = vrot.slane %v115, 4
  %v345 = vrot.slane %v114, 4
  %v346 = vrot.slane %v113, 4
  %v359 = vrot.slane %v190, 4
  %v360 = vrot.slane %v189, 4
  %v361 = vrot.slane %v188, 4
  %v362 = vrot.slane %v187, 4
  %v363 = vrot.slane %v186, 4
  %v364 = vrot.slane %v185, 4
  %371 = vst [vmem:[#allocation1] ss:$2 sm:$0xff] %v37
  %s372 = scalar_lea.vmem [#allocation1], 16
  %373 = vst [vmem:[%s372] ss:$2 sm:$0xff] %v38
  %s374 = scalar_lea.vmem [#allocation1], 32
  %375 = vst [vmem:[%s374] ss:$2 sm:$0xff] %v39
  %v376 = vld.sshfl [vmem:[#allocation1] sm:$0xff pattern:$0x75316420]
  %v377 = vld.sshfl [vmem:[#allocation1 + $0x8] sm:$0xff pattern:$0x75316420]
  %v378 = vld.sshfl [vmem:[#allocation1 + $0x10] sm:$0xff pattern:$0x75316420]
  %v379 = vld.sshfl [vmem:[#allocation1 + $0x18] sm:$0xff pattern:$0x75316420]
  %v380 = vld.sshfl [vmem:[#allocation1 + $0x20] sm:$0xff pattern:$0x75316420]
  %v381 = vld.sshfl [vmem:[#allocation1 + $0x28] sm:$0xff pattern:$0x75316420]
  %v394 = vrot.slane %v225, 4
  %v395 = vrot.slane %v224, 4
  %v396 = vrot.slane %v223, 4
  %v397 = vrot.slane %v222, 4
  %v398 = vrot.slane %v221, 4
  %v399 = vrot.slane %v226, 4
  %v412 = vrot.slane %v297, 4
  %v413 = vrot.slane %v296, 4
  %v414 = vrot.slane %v295, 4
  %v415 = vrot.slane %v294, 4
  %v416 = vrot.slane %v293, 4
  %v417 = vrot.slane %v298, 4
  %vm424 = vcmask 1043456
  %v425 = vsel %vm424, %v82, %v341
  %v426 = vsel %vm424, %v81, %v342
  %v427 = vsel %vm424, %v80, %v343
  %v428 = vsel %vm424, %v79, %v344
  %v429 = vsel %vm424, %v78, %v345
  %v430 = vsel %vm424, %v77, %v346
  %v431 = vsel %vm424, %v154, %v359
  %v432 = vsel %vm424, %v153, %v360
  %v433 = vsel %vm424, %v152, %v361
  %v434 = vsel %vm424, %v151, %v362
  %v435 = vsel %vm424, %v150, %v363
  %v436 = vsel %vm424, %v149, %v364
  %v437 = vsel %vm424, %v376, %v394
  %v438 = vsel %vm424, %v377, %v395
  %v439 = vsel %vm424, %v378, %v396
  %v440 = vsel %vm424, %v379, %v397
  %v441 = vsel %vm424, %v380, %v398
  %v442 = vsel %vm424, %v381, %v399
  %v443 = vsel %vm424, %v261, %v412
  %v444 = vsel %vm424, %v260, %v413
  %v445 = vsel %vm424, %v259, %v414
  %v446 = vsel %vm424, %v258, %v415
  %v447 = vsel %vm424, %v257, %v416
  %v448 = vsel %vm424, %v262, %v417
  %v449 = vpack.c.bf16 %v431, %v425
  %v450 = vpack.c.bf16 %v432, %v426
  %v451 = vpack.c.bf16 %v433, %v427
  %v452 = vpack.c.bf16 %v434, %v428
  %v453 = vpack.c.bf16 %v435, %v429
  %v454 = vpack.c.bf16 %v436, %v430
  %v455 = vpack.c.bf16 %v443, %v437
  %v456 = vpack.c.bf16 %v444, %v438
  %v457 = vpack.c.bf16 %v445, %v439
  %v458 = vpack.c.bf16 %v446, %v440
  %v459 = vpack.c.bf16 %v447, %v441
  %v460 = vpack.c.bf16 %v448, %v442
  %v461 = vpack.c.bf16 %v333, %v333
  %v462 = vpack.c.bf16 %v332, %v332
  %v463 = vpack.c.bf16 %v331, %v331
  %v464 = vpack.c.bf16 %v330, %v330
  %v465 = vpack.c.bf16 %v329, %v329
  %v466 = vpack.c.bf16 %v334, %v334
  %v467 = vld [vmem:[%s2] sm:$0xf]
  %vm468 = vcmask 293888
  %v470 = vsel %vm468, %v467, 0
  %vm472 = vcmask 1041408
  %v474 = vsel %vm472, %v461, 0
  %v477 = vsel %vm472, %v462, 0
  %v480 = vsel %vm472, %v463, 0
  %v483 = vsel %vm472, %v464, 0
  %v486 = vsel %vm472, %v465, 0
  %v489 = vsel %vm472, %v466, 0
  %491 = vmatpush.bf16.msra.mxu0 0
  %492 = vmatpush.bf16.msra.mxu0 0
  %493 = vmatpush.bf16.msra.mxu0 0
  %494 = vmatpush.bf16.msra.mxu0 0
  %495 = vmatpush.bf16.msra.mxu0 0
  %496 = vmatpush.bf16.msra.mxu0 %v474
  %497 = vmatpush.bf16.msra.mxu0 %v455
  %498 = vmatpush.bf16.msra.mxu0 %v449
  %499 = vmatmul.bf16.gmra.mxu0 %v470
  %v500 = vpop.f32.mrf.mxu0
  %v501 = vadd.f32 0.0, %v500
  %v502 = vpop.f32.mrf.mxu0
  %503 = vdwg.mxu0
  %504 = vmatpush.bf16.msra.mxu0 0
  %505 = vmatpush.bf16.msra.mxu0 0
  %506 = vmatpush.bf16.msra.mxu0 0
  %507 = vmatpush.bf16.msra.mxu0 0
  %508 = vmatpush.bf16.msra.mxu0 0
  %509 = vmatpush.bf16.msra.mxu0 %v477
  %510 = vmatpush.bf16.msra.mxu0 %v456
  %511 = vmatpush.bf16.msra.mxu0 %v450
  %512 = vmatmul.bf16.gmra.mxu0 %v470
  %v513 = vpop.f32.mrf.mxu0
  %v514 = vadd.f32 0.0, %v513
  %v515 = vpop.f32.mrf.mxu0
  %516 = vdwg.mxu0
  %517 = vmatpush.bf16.msra.mxu0 0
  %518 = vmatpush.bf16.msra.mxu0 0
  %519 = vmatpush.bf16.msra.mxu0 0
  %520 = vmatpush.bf16.msra.mxu0 0
  %521 = vmatpush.bf16.msra.mxu0 0
  %522 = vmatpush.bf16.msra.mxu0 %v480
  %523 = vmatpush.bf16.msra.mxu0 %v457
  %524 = vmatpush.bf16.msra.mxu0 %v451
  %525 = vmatmul.bf16.gmra.mxu0 %v470
  %v526 = vpop.f32.mrf.mxu0
  %v527 = vadd.f32 0.0, %v526
  %v528 = vpop.f32.mrf.mxu0
  %529 = vdwg.mxu0
  %530 = vmatpush.bf16.msra.mxu0 0
  %531 = vmatpush.bf16.msra.mxu0 0
  %532 = vmatpush.bf16.msra.mxu0 0
  %533 = vmatpush.bf16.msra.mxu0 0
  %534 = vmatpush.bf16.msra.mxu0 0
  %535 = vmatpush.bf16.msra.mxu0 %v483
  %536 = vmatpush.bf16.msra.mxu0 %v458
  %537 = vmatpush.bf16.msra.mxu0 %v452
  %538 = vmatmul.bf16.gmra.mxu0 %v470
  %v539 = vpop.f32.mrf.mxu0
  %v540 = vadd.f32 0.0, %v539
  %v541 = vpop.f32.mrf.mxu0
  %542 = vdwg.mxu0
  %543 = vmatpush.bf16.msra.mxu0 0
  %544 = vmatpush.bf16.msra.mxu0 0
  %545 = vmatpush.bf16.msra.mxu0 0
  %546 = vmatpush.bf16.msra.mxu0 0
  %547 = vmatpush.bf16.msra.mxu0 0
  %548 = vmatpush.bf16.msra.mxu0 %v486
  %549 = vmatpush.bf16.msra.mxu0 %v459
  %550 = vmatpush.bf16.msra.mxu0 %v453
  %551 = vmatmul.bf16.gmra.mxu0 %v470
  %v552 = vpop.f32.mrf.mxu0
  %v553 = vadd.f32 0.0, %v552
  %v554 = vpop.f32.mrf.mxu0
  %555 = vdwg.mxu0
  %556 = vmatpush.bf16.msra.mxu0 0
  %557 = vmatpush.bf16.msra.mxu0 0
  %558 = vmatpush.bf16.msra.mxu0 0
  %559 = vmatpush.bf16.msra.mxu0 0
  %560 = vmatpush.bf16.msra.mxu0 0
  %561 = vmatpush.bf16.msra.mxu0 %v489
  %562 = vmatpush.bf16.msra.mxu0 %v460
  %563 = vmatpush.bf16.msra.mxu0 %v454
  %564 = vmatmul.bf16.gmra.mxu0 %v470
  %v565 = vpop.f32.mrf.mxu0
  %v566 = vadd.f32 0.0, %v565
  %v567 = vpop.f32.mrf.mxu0
  %568 = vdwg.mxu0
  %v570 = vperm.slane %v36, 0
  %v571 = vperm.slane %v36, 1
  %v572 = vperm.slane %v36, 2
  %v573 = vperm.slane %v36, 3
  %v574 = vperm.slane %v36, 4
  %v575 = vperm.slane %v36, 5
  %v582 = vmul.f32 %v501, %v570
  %v583 = vmul.f32 %v514, %v571
  %v584 = vmul.f32 %v527, %v572
  %v585 = vmul.f32 %v540, %v573
  %v586 = vmul.f32 %v553, %v574
  %v587 = vmul.f32 %v566, %v575
  %v588 = vadd.f32 %v582, %v583
  %v589 = vadd.f32 %v588, %v584
  %v590 = vadd.f32 %v589, %v585
  %v591 = vadd.f32 %v590, %v586
  %v592 = vadd.f32 %v591, %v587
  %593 = vadd.xlane.f32.xlu0 %v592
  %v594 = vpop.xlane.xlu0 %593
  %v595 = vmul.f32 %v594, 0.001953125
  %v596 = vmul.f32 %v582, %v501
  %v597 = vmul.f32 %v583, %v514
  %v598 = vmul.f32 %v584, %v527
  %v599 = vmul.f32 %v585, %v540
  %v600 = vmul.f32 %v586, %v553
  %v601 = vmul.f32 %v587, %v566
  %v602 = vadd.f32 %v596, %v597
  %v603 = vadd.f32 %v602, %v598
  %v604 = vadd.f32 %v603, %v599
  %v605 = vadd.f32 %v604, %v600
  %v606 = vadd.f32 %v605, %v601
  %607 = vadd.xlane.f32.xlu0 %v606
  %v608 = vpop.xlane.xlu0 %607
  %v609 = vmul.f32 %v608, 0.001953125
  %v610 = vmul.f32 %v595, %v595
  %v611 = vsub.f32 %v609, %v610
  %v612 = vadd.f32 %v611, 1e-05
  %v613 = vrsqrt.pop %v612
  %v614 = vmul.f32 %v613, %v612
  %v615 = vmul.f32 %v614, %v613
  %v616 = vmul.f32 0.5, %v615
  %v617 = vsub.f32 1.5, %v616
  %v618 = vmul.f32 %v613, %v617
  %vm619 = vweird.f32 %v612
  %vm620 = vweird.f32 %v613
  %vm621 = vmor %vm619, %vm620
  %v622 = vsel %vm621, %v613, %v618
  %v623 = vmul.f32 %v40, %v622
  %v624 = vmul.f32 %v595, %v623
  %v625 = vsub.f32 %v41, %v624
  %627 = vset.pattern.permute.xlu0 0
  %628 = vperm.xlu0 %627, %v623
  %v629 = vpop.permute.xlu0 %628
  %v631 = vmul.f32 %v501, %v629
  %v632 = vmul.f32 %v514, %v629
  %v633 = vmul.f32 %v527, %v629
  %v634 = vmul.f32 %v540, %v629
  %v635 = vmul.f32 %v553, %v629
  %v636 = vmul.f32 %v566, %v629
  %638 = vset.pattern.permute.xlu0 0
  %639 = vperm.xlu0 %638, %v625
  %v640 = vpop.permute.xlu0 %639
  %v642 = vadd.f32 %v631, %v640
  %v643 = vadd.f32 %v632, %v640
  %v644 = vadd.f32 %v633, %v640
  %v645 = vadd.f32 %v634, %v640
  %v646 = vadd.f32 %v635, %v640
  %v647 = vadd.f32 %v636, %v640
  %v648 = vmax.f32 %v642, 0.0
  %v649 = vmax.f32 %v643, 0.0
  %v650 = vmax.f32 %v644, 0.0
  %v651 = vmax.f32 %v645, 0.0
  %v652 = vmax.f32 %v646, 0.0
  %v653 = vmax.f32 %v647, 0.0
  %v654 = vmul.f32 %v648, %v570
  %v655 = vmul.f32 %v649, %v571
  %v656 = vmul.f32 %v650, %v572
  %v657 = vmul.f32 %v651, %v573
  %v658 = vmul.f32 %v652, %v574
  %v659 = vmul.f32 %v653, %v575
  %660 = vrot.lane.b32.xlu0 %v654, 19
  %v661 = vpop.permute.xlu0 %660
  %662 = vrot.lane.b32.xlu0 %v655, 19
  %v663 = vpop.permute.xlu0 %662
  %664 = vrot.lane.b32.xlu0 %v656, 19
  %v665 = vpop.permute.xlu0 %664
  %666 = vrot.lane.b32.xlu0 %v657, 19
  %v667 = vpop.permute.xlu0 %666
  %668 = vrot.lane.b32.xlu0 %v658, 19
  %v669 = vpop.permute.xlu0 %668
  %670 = vrot.lane.b32.xlu0 %v659, 19
  %v671 = vpop.permute.xlu0 %670
  %v672 = vsel %vm76, %v669, %v671
  %v673 = vsel %vm76, %v667, %v669
  %v674 = vsel %vm76, %v665, %v667
  %v675 = vsel %vm76, %v663, %v665
  %v676 = vsel %vm76, %v661, %v663
  %v677 = vsel %vm76, %v671, %v661
  %678 = vrot.lane.b32.xlu0 %v654, 18
  %v679 = vpop.permute.xlu0 %678
  %680 = vrot.lane.b32.xlu0 %v655, 18
  %v681 = vpop.permute.xlu0 %680
  %682 = vrot.lane.b32.xlu0 %v656, 18
  %v683 = vpop.permute.xlu0 %682
  %684 = vrot.lane.b32.xlu0 %v657, 18
  %v685 = vpop.permute.xlu0 %684
  %686 = vrot.lane.b32.xlu0 %v658, 18
  %v687 = vpop.permute.xlu0 %686
  %688 = vrot.lane.b32.xlu0 %v659, 18
  %v689 = vpop.permute.xlu0 %688
  %v690 = vsel %vm112, %v687, %v689
  %v691 = vsel %vm112, %v685, %v687
  %v692 = vsel %vm112, %v683, %v685
  %v693 = vsel %vm112, %v681, %v683
  %v694 = vsel %vm112, %v679, %v681
  %v695 = vsel %vm112, %v689, %v679
  %696 = vrot.lane.b32.xlu0 %v654, 17
  %v697 = vpop.permute.xlu0 %696
  %698 = vrot.lane.b32.xlu0 %v655, 17
  %v699 = vpop.permute.xlu0 %698
  %700 = vrot.lane.b32.xlu0 %v656, 17
  %v701 = vpop.permute.xlu0 %700
  %702 = vrot.lane.b32.xlu0 %v657, 17
  %v703 = vpop.permute.xlu0 %702
  %704 = vrot.lane.b32.xlu0 %v658, 17
  %v705 = vpop.permute.xlu0 %704
  %706 = vrot.lane.b32.xlu0 %v659, 17
  %v707 = vpop.permute.xlu0 %706
  %v708 = vsel %vm148, %v705, %v707
  %v709 = vsel %vm148, %v703, %v705
  %v710 = vsel %vm148, %v701, %v703
  %v711 = vsel %vm148, %v699, %v701
  %v712 = vsel %vm148, %v697, %v699
  %v713 = vsel %vm148, %v707, %v697
  %714 = vrot.lane.b32.xlu0 %v654, 1
  %v715 = vpop.permute.xlu0 %714
  %716 = vrot.lane.b32.xlu0 %v655, 1
  %v717 = vpop.permute.xlu0 %716
  %718 = vrot.lane.b32.xlu0 %v656, 1
  %v719 = vpop.permute.xlu0 %718
  %720 = vrot.lane.b32.xlu0 %v657, 1
  %v721 = vpop.permute.xlu0 %720
  %722 = vrot.lane.b32.xlu0 %v658, 1
  %v723 = vpop.permute.xlu0 %722
  %724 = vrot.lane.b32.xlu0 %v659, 1
  %v725 = vpop.permute.xlu0 %724
  %v726 = vsel %vm184, %v723, %v725
  %v727 = vsel %vm184, %v721, %v723
  %v728 = vsel %vm184, %v719, %v721
  %v729 = vsel %vm184, %v717, %v719
  %v730 = vsel %vm184, %v715, %v717
  %v731 = vsel %vm184, %v725, %v715
  %732 = vrot.lane.b32.xlu0 %v654, 127
  %v733 = vpop.permute.xlu0 %732
  %734 = vrot.lane.b32.xlu0 %v655, 127
  %v735 = vpop.permute.xlu0 %734
  %736 = vrot.lane.b32.xlu0 %v656, 127
  %v737 = vpop.permute.xlu0 %736
  %738 = vrot.lane.b32.xlu0 %v657, 127
  %v739 = vpop.permute.xlu0 %738
  %740 = vrot.lane.b32.xlu0 %v658, 127
  %v741 = vpop.permute.xlu0 %740
  %742 = vrot.lane.b32.xlu0 %v659, 127
  %v743 = vpop.permute.xlu0 %742
  %v744 = vsel %vm220, %v741, %v743
  %v745 = vsel %vm220, %v739, %v741
  %v746 = vsel %vm220, %v737, %v739
  %v747 = vsel %vm220, %v735, %v737
  %v748 = vsel %vm220, %v733, %v735
  %v749 = vsel %vm220, %v743, %v733
  %750 = vrot.lane.b32.xlu0 %v654, 111
  %v751 = vpop.permute.xlu0 %750
  %752 = vrot.lane.b32.xlu0 %v655, 111
  %v753 = vpop.permute.xlu0 %752
  %754 = vrot.lane.b32.xlu0 %v656, 111
  %v755 = vpop.permute.xlu0 %754
  %756 = vrot.lane.b32.xlu0 %v657, 111
  %v757 = vpop.permute.xlu0 %756
  %758 = vrot.lane.b32.xlu0 %v658, 111
  %v759 = vpop.permute.xlu0 %758
  %760 = vrot.lane.b32.xlu0 %v659, 111
  %v761 = vpop.permute.xlu0 %760
  %v762 = vsel %vm256, %v759, %v761
  %v763 = vsel %vm256, %v757, %v759
  %v764 = vsel %vm256, %v755, %v757
  %v765 = vsel %vm256, %v753, %v755
  %v766 = vsel %vm256, %v751, %v753
  %v767 = vsel %vm256, %v761, %v751
  %768 = vrot.lane.b32.xlu0 %v654, 110
  %v769 = vpop.permute.xlu0 %768
  %770 = vrot.lane.b32.xlu0 %v655, 110
  %v771 = vpop.permute.xlu0 %770
  %772 = vrot.lane.b32.xlu0 %v656, 110
  %v773 = vpop.permute.xlu0 %772
  %774 = vrot.lane.b32.xlu0 %v657, 110
  %v775 = vpop.permute.xlu0 %774
  %776 = vrot.lane.b32.xlu0 %v658, 110
  %v777 = vpop.permute.xlu0 %776
  %778 = vrot.lane.b32.xlu0 %v659, 110
  %v779 = vpop.permute.xlu0 %778
  %v780 = vsel %vm292, %v777, %v779
  %v781 = vsel %vm292, %v775, %v777
  %v782 = vsel %vm292, %v773, %v775
  %v783 = vsel %vm292, %v771, %v773
  %v784 = vsel %vm292, %v769, %v771
  %v785 = vsel %vm292, %v779, %v769
  %786 = vrot.lane.b32.xlu0 %v654, 109
  %v787 = vpop.permute.xlu0 %786
  %788 = vrot.lane.b32.xlu0 %v655, 109
  %v789 = vpop.permute.xlu0 %788
  %790 = vrot.lane.b32.xlu0 %v656, 109
  %v791 = vpop.permute.xlu0 %790
  %792 = vrot.lane.b32.xlu0 %v657, 109
  %v793 = vpop.permute.xlu0 %792
  %794 = vrot.lane.b32.xlu0 %v658, 109
  %v795 = vpop.permute.xlu0 %794
  %796 = vrot.lane.b32.xlu0 %v659, 109
  %v797 = vpop.permute.xlu0 %796
  %v798 = vsel %vm328, %v795, %v797
  %v799 = vsel %vm328, %v793, %v795
  %v800 = vsel %vm328, %v791, %v793
  %v801 = vsel %vm328, %v789, %v791
  %v802 = vsel %vm328, %v787, %v789
  %v803 = vsel %vm328, %v797, %v787
  %v804 = vpack.c.bf16 %v695, %v677
  %v805 = vpack.c.bf16 %v694, %v676
  %v806 = vpack.c.bf16 %v693, %v675
  %v807 = vpack.c.bf16 %v692, %v674
  %v808 = vpack.c.bf16 %v691, %v673
  %v809 = vpack.c.bf16 %v690, %v672
  %v810 = vpack.c.bf16 %v731, %v713
  %v811 = vpack.c.bf16 %v730, %v712
  %v812 = vpack.c.bf16 %v729, %v711
  %v813 = vpack.c.bf16 %v728, %v710
  %v814 = vpack.c.bf16 %v727, %v709
  %v815 = vpack.c.bf16 %v726, %v708
  %v816 = vpack.c.bf16 %v748, %v654
  %v817 = vpack.c.bf16 %v747, %v655
  %v818 = vpack.c.bf16 %v746, %v656
  %v819 = vpack.c.bf16 %v745, %v657
  %v820 = vpack.c.bf16 %v744, %v658
  %v821 = vpack.c.bf16 %v749, %v659
  %v822 = vpack.c.bf16 %v784, %v766
  %v823 = vpack.c.bf16 %v783, %v765
  %v824 = vpack.c.bf16 %v782, %v764
  %v825 = vpack.c.bf16 %v781, %v763
  %v826 = vpack.c.bf16 %v780, %v762
  %v827 = vpack.c.bf16 %v785, %v767
  %v828 = vpack.c.bf16 %v802, %v802
  %v829 = vpack.c.bf16 %v801, %v801
  %v830 = vpack.c.bf16 %v800, %v800
  %v831 = vpack.c.bf16 %v799, %v799
  %v832 = vpack.c.bf16 %v798, %v798
  %v833 = vpack.c.bf16 %v803, %v803
  %v834 = vld [vmem:[%s3] sm:$0xf]
  %vm835 = vcmask 588800
  %v837 = vsel %vm835, %v834, 0
  %v840 = vsel %vm424, %v828, 0
  %v843 = vsel %vm424, %v829, 0
  %v846 = vsel %vm424, %v830, 0
  %v849 = vsel %vm424, %v831, 0
  %v852 = vsel %vm424, %v832, 0
  %v855 = vsel %vm424, %v833, 0
  %857 = vmatpush.bf16.msra.mxu0 0
  %858 = vmatpush.bf16.msra.mxu0 0
  %859 = vmatpush.bf16.msra.mxu0 0
  %860 = vmatpush.bf16.msra.mxu0 %v840
  %861 = vmatpush.bf16.msra.mxu0 %v822
  %862 = vmatpush.bf16.msra.mxu0 %v816
  %863 = vmatpush.bf16.msra.mxu0 %v810
  %864 = vmatpush.bf16.msra.mxu0 %v804
  %865 = vmatmul.bf16.gmra.mxu0 %v837
  %v866 = vpop.f32.mrf.mxu0
  %v867 = vadd.f32 0.0, %v866
  %v868 = vpop.f32.mrf.mxu0
  %869 = vdwg.mxu0
  %870 = vmatpush.bf16.msra.mxu0 0
  %871 = vmatpush.bf16.msra.mxu0 0
  %872 = vmatpush.bf16.msra.mxu0 0
  %873 = vmatpush.bf16.msra.mxu0 %v843
  %874 = vmatpush.bf16.msra.mxu0 %v823
  %875 = vmatpush.bf16.msra.mxu0 %v817
  %876 = vmatpush.bf16.msra.mxu0 %v811
  %877 = vmatpush.bf16.msra.mxu0 %v805
  %878 = vmatmul.bf16.gmra.mxu0 %v837
  %v879 = vpop.f32.mrf.mxu0
  %v880 = vadd.f32 0.0, %v879
  %v881 = vpop.f32.mrf.mxu0
  %882 = vdwg.mxu0
  %883 = vmatpush.bf16.msra.mxu0 0
  %884 = vmatpush.bf16.msra.mxu0 0
  %885 = vmatpush.bf16.msra.mxu0 0
  %886 = vmatpush.bf16.msra.mxu0 %v846
  %887 = vmatpush.bf16.msra.mxu0 %v824
  %888 = vmatpush.bf16.msra.mxu0 %v818
  %889 = vmatpush.bf16.msra.mxu0 %v812
  %890 = vmatpush.bf16.msra.mxu0 %v806
  %891 = vmatmul.bf16.gmra.mxu0 %v837
  %v892 = vpop.f32.mrf.mxu0
  %v893 = vadd.f32 0.0, %v892
  %v894 = vpop.f32.mrf.mxu0
  %895 = vdwg.mxu0
  %896 = vmatpush.bf16.msra.mxu0 0
  %897 = vmatpush.bf16.msra.mxu0 0
  %898 = vmatpush.bf16.msra.mxu0 0
  %899 = vmatpush.bf16.msra.mxu0 %v849
  %900 = vmatpush.bf16.msra.mxu0 %v825
  %901 = vmatpush.bf16.msra.mxu0 %v819
  %902 = vmatpush.bf16.msra.mxu0 %v813
  %903 = vmatpush.bf16.msra.mxu0 %v807
  %904 = vmatmul.bf16.gmra.mxu0 %v837
  %v905 = vpop.f32.mrf.mxu0
  %v906 = vadd.f32 0.0, %v905
  %v907 = vpop.f32.mrf.mxu0
  %908 = vdwg.mxu0
  %909 = vmatpush.bf16.msra.mxu0 0
  %910 = vmatpush.bf16.msra.mxu0 0
  %911 = vmatpush.bf16.msra.mxu0 0
  %912 = vmatpush.bf16.msra.mxu0 %v852
  %913 = vmatpush.bf16.msra.mxu0 %v826
  %914 = vmatpush.bf16.msra.mxu0 %v820
  %915 = vmatpush.bf16.msra.mxu0 %v814
  %916 = vmatpush.bf16.msra.mxu0 %v808
  %917 = vmatmul.bf16.gmra.mxu0 %v837
  %v918 = vpop.f32.mrf.mxu0
  %v919 = vadd.f32 0.0, %v918
  %v920 = vpop.f32.mrf.mxu0
  %921 = vdwg.mxu0
  %922 = vmatpush.bf16.msra.mxu0 0
  %923 = vmatpush.bf16.msra.mxu0 0
  %924 = vmatpush.bf16.msra.mxu0 0
  %925 = vmatpush.bf16.msra.mxu0 %v855
  %926 = vmatpush.bf16.msra.mxu0 %v827
  %927 = vmatpush.bf16.msra.mxu0 %v821
  %928 = vmatpush.bf16.msra.mxu0 %v815
  %929 = vmatpush.bf16.msra.mxu0 %v809
  %930 = vmatmul.bf16.gmra.mxu0 %v837
  %v931 = vpop.f32.mrf.mxu0
  %v932 = vadd.f32 0.0, %v931
  %v933 = vpop.f32.mrf.mxu0
  %934 = vdwg.mxu0
  %v935 = vmul.f32 %v867, %v570
  %v936 = vmul.f32 %v880, %v571
  %v937 = vmul.f32 %v893, %v572
  %v938 = vmul.f32 %v906, %v573
  %v939 = vmul.f32 %v919, %v574
  %v940 = vmul.f32 %v932, %v575
  %v941 = vadd.f32 %v935, %v936
  %v942 = vadd.f32 %v941, %v937
  %v943 = vadd.f32 %v942, %v938
  %v944 = vadd.f32 %v943, %v939
  %v945 = vadd.f32 %v944, %v940
  %946 = vadd.xlane.f32.xlu0 %v945
  %v947 = vpop.xlane.xlu0 %946
  %v948 = vmul.f32 %v947, 0.001953125
  %v949 = vmul.f32 %v935, %v867
  %v950 = vmul.f32 %v936, %v880
  %v951 = vmul.f32 %v937, %v893
  %v952 = vmul.f32 %v938, %v906
  %v953 = vmul.f32 %v939, %v919
  %v954 = vmul.f32 %v940, %v932
  %v955 = vadd.f32 %v949, %v950
  %v956 = vadd.f32 %v955, %v951
  %v957 = vadd.f32 %v956, %v952
  %v958 = vadd.f32 %v957, %v953
  %v959 = vadd.f32 %v958, %v954
  %960 = vadd.xlane.f32.xlu0 %v959
  %v961 = vpop.xlane.xlu0 %960
  %v962 = vmul.f32 %v961, 0.001953125
  %v963 = vmul.f32 %v948, %v948
  %v964 = vsub.f32 %v962, %v963
  %v965 = vadd.f32 %v964, 1e-05
  %v966 = vrsqrt.pop %v965
  %v967 = vmul.f32 %v966, %v965
  %v968 = vmul.f32 %v967, %v966
  %v969 = vmul.f32 0.5, %v968
  %v970 = vsub.f32 1.5, %v969
  %v971 = vmul.f32 %v966, %v970
  %vm972 = vweird.f32 %v965
  %vm973 = vweird.f32 %v966
  %vm974 = vmor %vm972, %vm973
  %v975 = vsel %vm974, %v966, %v971
  %v976 = vmul.f32 %v40, %v975
  %v977 = vmul.f32 %v948, %v976
  %v978 = vsub.f32 %v41, %v977
  %980 = vset.pattern.permute.xlu0 0
  %981 = vperm.xlu0 %980, %v976
  %v982 = vpop.permute.xlu0 %981
  %v984 = vmul.f32 %v867, %v982
  %v985 = vmul.f32 %v880, %v982
  %v986 = vmul.f32 %v893, %v982
  %v987 = vmul.f32 %v906, %v982
  %v988 = vmul.f32 %v919, %v982
  %v989 = vmul.f32 %v932, %v982
  %991 = vset.pattern.permute.xlu0 0
  %992 = vperm.xlu0 %991, %v978
  %v993 = vpop.permute.xlu0 %992
  %v995 = vadd.f32 %v984, %v993
  %v996 = vadd.f32 %v985, %v993
  %v997 = vadd.f32 %v986, %v993
  %v998 = vadd.f32 %v987, %v993
  %v999 = vadd.f32 %v988, %v993
  %v1000 = vadd.f32 %v989, %v993
  %1001 = vst [vmem:[#allocation1] ss:$2 sm:$0xff] %v37
  %s1002 = scalar_lea.vmem [#allocation1], 16
  %1003 = vst [vmem:[%s1002] ss:$2 sm:$0xff] %v38
  %s1004 = scalar_lea.vmem [#allocation1], 32
  %1005 = vst [vmem:[%s1004] ss:$2 sm:$0xff] %v39
  %v1006 = vld.sshfl [vmem:[#allocation1] sm:$0xff pattern:$0x75316420]
  %v1007 = vld.sshfl [vmem:[#allocation1 + $0x8] sm:$0xff pattern:$0x75316420]
  %v1008 = vld.sshfl [vmem:[#allocation1 + $0x10] sm:$0xff pattern:$0x75316420]
  %v1009 = vld.sshfl [vmem:[#allocation1 + $0x18] sm:$0xff pattern:$0x75316420]
  %v1010 = vld.sshfl [vmem:[#allocation1 + $0x20] sm:$0xff pattern:$0x75316420]
  %v1011 = vld.sshfl [vmem:[#allocation1 + $0x28] sm:$0xff pattern:$0x75316420]
  %v1018 = vadd.f32 %v995, %v1006
  %v1019 = vadd.f32 %v996, %v1007
  %v1020 = vadd.f32 %v997, %v1008
  %v1021 = vadd.f32 %v998, %v1009
  %v1022 = vadd.f32 %v999, %v1010
  %v1023 = vadd.f32 %v1000, %v1011
  %v1024 = vsel %vm424, %v1018, %v995
  %v1025 = vsel %vm424, %v1019, %v996
  %v1026 = vsel %vm424, %v1020, %v997
  %v1027 = vsel %vm424, %v1021, %v998
  %v1028 = vsel %vm424, %v1022, %v999
  %v1029 = vsel %vm424, %v1023, %v1000
  %v1030 = vmax.f32 %v1024, 0.0
  %v1031 = vmax.f32 %v1025, 0.0
  %v1032 = vmax.f32 %v1026, 0.0
  %v1033 = vmax.f32 %v1027, 0.0
  %v1034 = vmax.f32 %v1028, 0.0
  %v1035 = vmax.f32 %v1029, 0.0
  %v1036 = vmul.f32 %v1030, %v570
  %v1037 = vmul.f32 %v1031, %v571
  %v1038 = vmul.f32 %v1032, %v572
  %v1039 = vmul.f32 %v1033, %v573
  %v1040 = vmul.f32 %v1034, %v574
  %v1041 = vmul.f32 %v1035, %v575
  %v1042 = vld [vmem:[%s8] sm:$0xff]
  %v1043 = vld [vmem:[%s9] sm:$0xff]
  %1044 = vrot.lane.b32.xlu0 %v1036, 19
  %v1045 = vpop.permute.xlu0 %1044
  %1046 = vrot.lane.b32.xlu0 %v1037, 19
  %v1047 = vpop.permute.xlu0 %1046
  %1048 = vrot.lane.b32.xlu0 %v1038, 19
  %v1049 = vpop.permute.xlu0 %1048
  %1050 = vrot.lane.b32.xlu0 %v1039, 19
  %v1051 = vpop.permute.xlu0 %1050
  %1052 = vrot.lane.b32.xlu0 %v1040, 19
  %v1053 = vpop.permute.xlu0 %1052
  %1054 = vrot.lane.b32.xlu0 %v1041, 19
  %v1055 = vpop.permute.xlu0 %1054
  %v1056 = vsel %vm76, %v1053, %v1055
  %v1057 = vsel %vm76, %v1051, %v1053
  %v1058 = vsel %vm76, %v1049, %v1051
  %v1059 = vsel %vm76, %v1047, %v1049
  %v1060 = vsel %vm76, %v1045, %v1047
  %v1061 = vsel %vm76, %v1055, %v1045
  %1062 = vrot.lane.b32.xlu0 %v1036, 18
  %v1063 = vpop.permute.xlu0 %1062
  %1064 = vrot.lane.b32.xlu0 %v1037, 18
  %v1065 = vpop.permute.xlu0 %1064
  %1066 = vrot.lane.b32.xlu0 %v1038, 18
  %v1067 = vpop.permute.xlu0 %1066
  %1068 = vrot.lane.b32.xlu0 %v1039, 18
  %v1069 = vpop.permute.xlu0 %1068
  %1070 = vrot.lane.b32.xlu0 %v1040, 18
  %v1071 = vpop.permute.xlu0 %1070
  %1072 = vrot.lane.b32.xlu0 %v1041, 18
  %v1073 = vpop.permute.xlu0 %1072
  %v1074 = vsel %vm112, %v1071, %v1073
  %v1075 = vsel %vm112, %v1069, %v1071
  %v1076 = vsel %vm112, %v1067, %v1069
  %v1077 = vsel %vm112, %v1065, %v1067
  %v1078 = vsel %vm112, %v1063, %v1065
  %v1079 = vsel %vm112, %v1073, %v1063
  %1080 = vrot.lane.b32.xlu0 %v1036, 17
  %v1081 = vpop.permute.xlu0 %1080
  %1082 = vrot.lane.b32.xlu0 %v1037, 17
  %v1083 = vpop.permute.xlu0 %1082
  %1084 = vrot.lane.b32.xlu0 %v1038, 17
  %v1085 = vpop.permute.xlu0 %1084
  %1086 = vrot.lane.b32.xlu0 %v1039, 17
  %v1087 = vpop.permute.xlu0 %1086
  %1088 = vrot.lane.b32.xlu0 %v1040, 17
  %v1089 = vpop.permute.xlu0 %1088
  %1090 = vrot.lane.b32.xlu0 %v1041, 17
  %v1091 = vpop.permute.xlu0 %1090
  %v1092 = vsel %vm148, %v1089, %v1091
  %v1093 = vsel %vm148, %v1087, %v1089
  %v1094 = vsel %vm148, %v1085, %v1087
  %v1095 = vsel %vm148, %v1083, %v1085
  %v1096 = vsel %vm148, %v1081, %v1083
  %v1097 = vsel %vm148, %v1091, %v1081
  %1098 = vrot.lane.b32.xlu0 %v1036, 1
  %v1099 = vpop.permute.xlu0 %1098
  %1100 = vrot.lane.b32.xlu0 %v1037, 1
  %v1101 = vpop.permute.xlu0 %1100
  %1102 = vrot.lane.b32.xlu0 %v1038, 1
  %v1103 = vpop.permute.xlu0 %1102
  %1104 = vrot.lane.b32.xlu0 %v1039, 1
  %v1105 = vpop.permute.xlu0 %1104
  %1106 = vrot.lane.b32.xlu0 %v1040, 1
  %v1107 = vpop.permute.xlu0 %1106
  %1108 = vrot.lane.b32.xlu0 %v1041, 1
  %v1109 = vpop.permute.xlu0 %1108
  %v1110 = vsel %vm184, %v1107, %v1109
  %v1111 = vsel %vm184, %v1105, %v1107
  %v1112 = vsel %vm184, %v1103, %v1105
  %v1113 = vsel %vm184, %v1101, %v1103
  %v1114 = vsel %vm184, %v1099, %v1101
  %v1115 = vsel %vm184, %v1109, %v1099
  %1116 = vrot.lane.b32.xlu0 %v1036, 127
  %v1117 = vpop.permute.xlu0 %1116
  %1118 = vrot.lane.b32.xlu0 %v1037, 127
  %v1119 = vpop.permute.xlu0 %1118
  %1120 = vrot.lane.b32.xlu0 %v1038, 127
  %v1121 = vpop.permute.xlu0 %1120
  %1122 = vrot.lane.b32.xlu0 %v1039, 127
  %v1123 = vpop.permute.xlu0 %1122
  %1124 = vrot.lane.b32.xlu0 %v1040, 127
  %v1125 = vpop.permute.xlu0 %1124
  %1126 = vrot.lane.b32.xlu0 %v1041, 127
  %v1127 = vpop.permute.xlu0 %1126
  %v1128 = vsel %vm220, %v1125, %v1127
  %v1129 = vsel %vm220, %v1123, %v1125
  %v1130 = vsel %vm220, %v1121, %v1123
  %v1131 = vsel %vm220, %v1119, %v1121
  %v1132 = vsel %vm220, %v1117, %v1119
  %v1133 = vsel %vm220, %v1127, %v1117
  %1134 = vrot.lane.b32.xlu0 %v1036, 111
  %v1135 = vpop.permute.xlu0 %1134
  %1136 = vrot.lane.b32.xlu0 %v1037, 111
  %v1137 = vpop.permute.xlu0 %1136
  %1138 = vrot.lane.b32.xlu0 %v1038, 111
  %v1139 = vpop.permute.xlu0 %1138
  %1140 = vrot.lane.b32.xlu0 %v1039, 111
  %v1141 = vpop.permute.xlu0 %1140
  %1142 = vrot.lane.b32.xlu0 %v1040, 111
  %v1143 = vpop.permute.xlu0 %1142
  %1144 = vrot.lane.b32.xlu0 %v1041, 111
  %v1145 = vpop.permute.xlu0 %1144
  %v1146 = vsel %vm256, %v1143, %v1145
  %v1147 = vsel %vm256, %v1141, %v1143
  %v1148 = vsel %vm256, %v1139, %v1141
  %v1149 = vsel %vm256, %v1137, %v1139
  %v1150 = vsel %vm256, %v1135, %v1137
  %v1151 = vsel %vm256, %v1145, %v1135
  %1152 = vrot.lane.b32.xlu0 %v1036, 110
  %v1153 = vpop.permute.xlu0 %1152
  %1154 = vrot.lane.b32.xlu0 %v1037, 110
  %v1155 = vpop.permute.xlu0 %1154
  %1156 = vrot.lane.b32.xlu0 %v1038, 110
  %v1157 = vpop.permute.xlu0 %1156
  %1158 = vrot.lane.b32.xlu0 %v1039, 110
  %v1159 = vpop.permute.xlu0 %1158
  %1160 = vrot.lane.b32.xlu0 %v1040, 110
  %v1161 = vpop.permute.xlu0 %1160
  %1162 = vrot.lane.b32.xlu0 %v1041, 110
  %v1163 = vpop.permute.xlu0 %1162
  %v1164 = vsel %vm292, %v1161, %v1163
  %v1165 = vsel %vm292, %v1159, %v1161
  %v1166 = vsel %vm292, %v1157, %v1159
  %v1167 = vsel %vm292, %v1155, %v1157
  %v1168 = vsel %vm292, %v1153, %v1155
  %v1169 = vsel %vm292, %v1163, %v1153
  %1170 = vrot.lane.b32.xlu0 %v1036, 109
  %v1171 = vpop.permute.xlu0 %1170
  %1172 = vrot.lane.b32.xlu0 %v1037, 109
  %v1173 = vpop.permute.xlu0 %1172
  %1174 = vrot.lane.b32.xlu0 %v1038, 109
  %v1175 = vpop.permute.xlu0 %1174
  %1176 = vrot.lane.b32.xlu0 %v1039, 109
  %v1177 = vpop.permute.xlu0 %1176
  %1178 = vrot.lane.b32.xlu0 %v1040, 109
  %v1179 = vpop.permute.xlu0 %1178
  %1180 = vrot.lane.b32.xlu0 %v1041, 109
  %v1181 = vpop.permute.xlu0 %1180
  %v1182 = vsel %vm328, %v1179, %v1181
  %v1183 = vsel %vm328, %v1177, %v1179
  %v1184 = vsel %vm328, %v1175, %v1177
  %v1185 = vsel %vm328, %v1173, %v1175
  %v1186 = vsel %vm328, %v1171, %v1173
  %v1187 = vsel %vm328, %v1181, %v1171
  %v1188 = vpack.c.bf16 %v1079, %v1061
  %v1189 = vpack.c.bf16 %v1078, %v1060
  %v1190 = vpack.c.bf16 %v1077, %v1059
  %v1191 = vpack.c.bf16 %v1076, %v1058
  %v1192 = vpack.c.bf16 %v1075, %v1057
  %v1193 = vpack.c.bf16 %v1074, %v1056
  %v1194 = vpack.c.bf16 %v1115, %v1097
  %v1195 = vpack.c.bf16 %v1114, %v1096
  %v1196 = vpack.c.bf16 %v1113, %v1095
  %v1197 = vpack.c.bf16 %v1112, %v1094
  %v1198 = vpack.c.bf16 %v1111, %v1093
  %v1199 = vpack.c.bf16 %v1110, %v1092
  %v1200 = vpack.c.bf16 %v1132, %v1036
  %v1201 = vpack.c.bf16 %v1131, %v1037
  %v1202 = vpack.c.bf16 %v1130, %v1038
  %v1203 = vpack.c.bf16 %v1129, %v1039
  %v1204 = vpack.c.bf16 %v1128, %v1040
  %v1205 = vpack.c.bf16 %v1133, %v1041
  %v1206 = vpack.c.bf16 %v1168, %v1150
  %v1207 = vpack.c.bf16 %v1167, %v1149
  %v1208 = vpack.c.bf16 %v1166, %v1148
  %v1209 = vpack.c.bf16 %v1165, %v1147
  %v1210 = vpack.c.bf16 %v1164, %v1146
  %v1211 = vpack.c.bf16 %v1169, %v1151
  %v1212 = vpack.c.bf16 %v1186, %v1186
  %v1213 = vpack.c.bf16 %v1185, %v1185
  %v1214 = vpack.c.bf16 %v1184, %v1184
  %v1215 = vpack.c.bf16 %v1183, %v1183
  %v1216 = vpack.c.bf16 %v1182, %v1182
  %v1217 = vpack.c.bf16 %v1187, %v1187
  %v1218 = vld [vmem:[%s6] sm:$0xf]
  %v1220 = vsel %vm835, %v1218, 0
  %v1223 = vsel %vm424, %v1212, 0
  %v1226 = vsel %vm424, %v1213, 0
  %v1229 = vsel %vm424, %v1214, 0
  %v1232 = vsel %vm424, %v1215, 0
  %v1235 = vsel %vm424, %v1216, 0
  %v1238 = vsel %vm424, %v1217, 0
  %1240 = vmatpush.bf16.msra.mxu0 0
  %1241 = vmatpush.bf16.msra.mxu0 0
  %1242 = vmatpush.bf16.msra.mxu0 0
  %1243 = vmatpush.bf16.msra.mxu0 %v1223
  %1244 = vmatpush.bf16.msra.mxu0 %v1206
  %1245 = vmatpush.bf16.msra.mxu0 %v1200
  %1246 = vmatpush.bf16.msra.mxu0 %v1194
  %1247 = vmatpush.bf16.msra.mxu0 %v1188
  %1248 = vmatmul.bf16.gmra.mxu0 %v1220
  %v1249 = vpop.f32.mrf.mxu0
  %v1250 = vadd.f32 0.0, %v1249
  %v1251 = vpop.f32.mrf.mxu0
  %1252 = vdwg.mxu0
  %1253 = vmatpush.bf16.msra.mxu0 0
  %1254 = vmatpush.bf16.msra.mxu0 0
  %1255 = vmatpush.bf16.msra.mxu0 0
  %1256 = vmatpush.bf16.msra.mxu0 %v1226
  %1257 = vmatpush.bf16.msra.mxu0 %v1207
  %1258 = vmatpush.bf16.msra.mxu0 %v1201
  %1259 = vmatpush.bf16.msra.mxu0 %v1195
  %1260 = vmatpush.bf16.msra.mxu0 %v1189
  %1261 = vmatmul.bf16.gmra.mxu0 %v1220
  %v1262 = vpop.f32.mrf.mxu0
  %v1263 = vadd.f32 0.0, %v1262
  %v1264 = vpop.f32.mrf.mxu0
  %1265 = vdwg.mxu0
  %1266 = vmatpush.bf16.msra.mxu0 0
  %1267 = vmatpush.bf16.msra.mxu0 0
  %1268 = vmatpush.bf16.msra.mxu0 0
  %1269 = vmatpush.bf16.msra.mxu0 %v1229
  %1270 = vmatpush.bf16.msra.mxu0 %v1208
  %1271 = vmatpush.bf16.msra.mxu0 %v1202
  %1272 = vmatpush.bf16.msra.mxu0 %v1196
  %1273 = vmatpush.bf16.msra.mxu0 %v1190
  %1274 = vmatmul.bf16.gmra.mxu0 %v1220
  %v1275 = vpop.f32.mrf.mxu0
  %v1276 = vadd.f32 0.0, %v1275
  %v1277 = vpop.f32.mrf.mxu0
  %1278 = vdwg.mxu0
  %1279 = vmatpush.bf16.msra.mxu0 0
  %1280 = vmatpush.bf16.msra.mxu0 0
  %1281 = vmatpush.bf16.msra.mxu0 0
  %1282 = vmatpush.bf16.msra.mxu0 %v1232
  %1283 = vmatpush.bf16.msra.mxu0 %v1209
  %1284 = vmatpush.bf16.msra.mxu0 %v1203
  %1285 = vmatpush.bf16.msra.mxu0 %v1197
  %1286 = vmatpush.bf16.msra.mxu0 %v1191
  %1287 = vmatmul.bf16.gmra.mxu0 %v1220
  %v1288 = vpop.f32.mrf.mxu0
  %v1289 = vadd.f32 0.0, %v1288
  %v1290 = vpop.f32.mrf.mxu0
  %1291 = vdwg.mxu0
  %1292 = vmatpush.bf16.msra.mxu0 0
  %1293 = vmatpush.bf16.msra.mxu0 0
  %1294 = vmatpush.bf16.msra.mxu0 0
  %1295 = vmatpush.bf16.msra.mxu0 %v1235
  %1296 = vmatpush.bf16.msra.mxu0 %v1210
  %1297 = vmatpush.bf16.msra.mxu0 %v1204
  %1298 = vmatpush.bf16.msra.mxu0 %v1198
  %1299 = vmatpush.bf16.msra.mxu0 %v1192
  %1300 = vmatmul.bf16.gmra.mxu0 %v1220
  %v1301 = vpop.f32.mrf.mxu0
  %v1302 = vadd.f32 0.0, %v1301
  %v1303 = vpop.f32.mrf.mxu0
  %1304 = vdwg.mxu0
  %1305 = vmatpush.bf16.msra.mxu0 0
  %1306 = vmatpush.bf16.msra.mxu0 0
  %1307 = vmatpush.bf16.msra.mxu0 0
  %1308 = vmatpush.bf16.msra.mxu0 %v1238
  %1309 = vmatpush.bf16.msra.mxu0 %v1211
  %1310 = vmatpush.bf16.msra.mxu0 %v1205
  %1311 = vmatpush.bf16.msra.mxu0 %v1199
  %1312 = vmatpush.bf16.msra.mxu0 %v1193
  %1313 = vmatmul.bf16.gmra.mxu0 %v1220
  %v1314 = vpop.f32.mrf.mxu0
  %v1315 = vadd.f32 0.0, %v1314
  %v1316 = vpop.f32.mrf.mxu0
  %1317 = vdwg.mxu0
  %v1318 = vmul.f32 %v1250, %v570
  %v1319 = vmul.f32 %v1263, %v571
  %v1320 = vmul.f32 %v1276, %v572
  %v1321 = vmul.f32 %v1289, %v573
  %v1322 = vmul.f32 %v1302, %v574
  %v1323 = vmul.f32 %v1315, %v575
  %v1324 = vadd.f32 %v1318, %v1319
  %v1325 = vadd.f32 %v1324, %v1320
  %v1326 = vadd.f32 %v1325, %v1321
  %v1327 = vadd.f32 %v1326, %v1322
  %v1328 = vadd.f32 %v1327, %v1323
  %1329 = vadd.xlane.f32.xlu0 %v1328
  %v1330 = vpop.xlane.xlu0 %1329
  %v1331 = vmul.f32 %v1330, 0.001953125
  %v1332 = vmul.f32 %v1318, %v1250
  %v1333 = vmul.f32 %v1319, %v1263
  %v1334 = vmul.f32 %v1320, %v1276
  %v1335 = vmul.f32 %v1321, %v1289
  %v1336 = vmul.f32 %v1322, %v1302
  %v1337 = vmul.f32 %v1323, %v1315
  %v1338 = vadd.f32 %v1332, %v1333
  %v1339 = vadd.f32 %v1338, %v1334
  %v1340 = vadd.f32 %v1339, %v1335
  %v1341 = vadd.f32 %v1340, %v1336
  %v1342 = vadd.f32 %v1341, %v1337
  %1343 = vadd.xlane.f32.xlu0 %v1342
  %v1344 = vpop.xlane.xlu0 %1343
  %v1345 = vmul.f32 %v1344, 0.001953125
  %v1346 = vmul.f32 %v1331, %v1331
  %v1347 = vsub.f32 %v1345, %v1346
  %v1348 = vadd.f32 %v1347, 1e-05
  %v1349 = vrsqrt.pop %v1348
  %v1350 = vmul.f32 %v1349, %v1348
  %v1351 = vmul.f32 %v1350, %v1349
  %v1352 = vmul.f32 0.5, %v1351
  %v1353 = vsub.f32 1.5, %v1352
  %v1354 = vmul.f32 %v1349, %v1353
  %vm1355 = vweird.f32 %v1348
  %vm1356 = vweird.f32 %v1349
  %vm1357 = vmor %vm1355, %vm1356
  %v1358 = vsel %vm1357, %v1349, %v1354
  %v1359 = vmul.f32 %v1042, %v1358
  %v1360 = vmul.f32 %v1331, %v1359
  %v1361 = vsub.f32 %v1043, %v1360
  %1363 = vset.pattern.permute.xlu0 0
  %1364 = vperm.xlu0 %1363, %v1359
  %v1365 = vpop.permute.xlu0 %1364
  %v1367 = vmul.f32 %v1250, %v1365
  %v1368 = vmul.f32 %v1263, %v1365
  %v1369 = vmul.f32 %v1276, %v1365
  %v1370 = vmul.f32 %v1289, %v1365
  %v1371 = vmul.f32 %v1302, %v1365
  %v1372 = vmul.f32 %v1315, %v1365
  %1374 = vset.pattern.permute.xlu0 0
  %1375 = vperm.xlu0 %1374, %v1361
  %v1376 = vpop.permute.xlu0 %1375
  %v1378 = vadd.f32 %v1367, %v1376
  %v1379 = vadd.f32 %v1368, %v1376
  %v1380 = vadd.f32 %v1369, %v1376
  %v1381 = vadd.f32 %v1370, %v1376
  %v1382 = vadd.f32 %v1371, %v1376
  %v1383 = vadd.f32 %v1372, %v1376
  %v1384 = vmax.f32 %v1378, 0.0
  %v1385 = vmax.f32 %v1379, 0.0
  %v1386 = vmax.f32 %v1380, 0.0
  %v1387 = vmax.f32 %v1381, 0.0
  %v1388 = vmax.f32 %v1382, 0.0
  %v1389 = vmax.f32 %v1383, 0.0
  %v1390 = vmul.f32 %v1384, %v570
  %v1391 = vmul.f32 %v1385, %v571
  %v1392 = vmul.f32 %v1386, %v572
  %v1393 = vmul.f32 %v1387, %v573
  %v1394 = vmul.f32 %v1388, %v574
  %v1395 = vmul.f32 %v1389, %v575
  %1396 = vrot.lane.b32.xlu0 %v1390, 19
  %v1397 = vpop.permute.xlu0 %1396
  %1398 = vrot.lane.b32.xlu0 %v1391, 19
  %v1399 = vpop.permute.xlu0 %1398
  %1400 = vrot.lane.b32.xlu0 %v1392, 19
  %v1401 = vpop.permute.xlu0 %1400
  %1402 = vrot.lane.b32.xlu0 %v1393, 19
  %v1403 = vpop.permute.xlu0 %1402
  %1404 = vrot.lane.b32.xlu0 %v1394, 19
  %v1405 = vpop.permute.xlu0 %1404
  %1406 = vrot.lane.b32.xlu0 %v1395, 19
  %v1407 = vpop.permute.xlu0 %1406
  %v1408 = vsel %vm76, %v1405, %v1407
  %v1409 = vsel %vm76, %v1403, %v1405
  %v1410 = vsel %vm76, %v1401, %v1403
  %v1411 = vsel %vm76, %v1399, %v1401
  %v1412 = vsel %vm76, %v1397, %v1399
  %v1413 = vsel %vm76, %v1407, %v1397
  %1414 = vrot.lane.b32.xlu0 %v1390, 18
  %v1415 = vpop.permute.xlu0 %1414
  %1416 = vrot.lane.b32.xlu0 %v1391, 18
  %v1417 = vpop.permute.xlu0 %1416
  %1418 = vrot.lane.b32.xlu0 %v1392, 18
  %v1419 = vpop.permute.xlu0 %1418
  %1420 = vrot.lane.b32.xlu0 %v1393, 18
  %v1421 = vpop.permute.xlu0 %1420
  %1422 = vrot.lane.b32.xlu0 %v1394, 18
  %v1423 = vpop.permute.xlu0 %1422
  %1424 = vrot.lane.b32.xlu0 %v1395, 18
  %v1425 = vpop.permute.xlu0 %1424
  %v1426 = vsel %vm112, %v1423, %v1425
  %v1427 = vsel %vm112, %v1421, %v1423
  %v1428 = vsel %vm112, %v1419, %v1421
  %v1429 = vsel %vm112, %v1417, %v1419
  %v1430 = vsel %vm112, %v1415, %v1417
  %v1431 = vsel %vm112, %v1425, %v1415
  %1432 = vrot.lane.b32.xlu0 %v1390, 17
  %v1433 = vpop.permute.xlu0 %1432
  %1434 = vrot.lane.b32.xlu0 %v1391, 17
  %v1435 = vpop.permute.xlu0 %1434
  %1436 = vrot.lane.b32.xlu0 %v1392, 17
  %v1437 = vpop.permute.xlu0 %1436
  %1438 = vrot.lane.b32.xlu0 %v1393, 17
  %v1439 = vpop.permute.xlu0 %1438
  %1440 = vrot.lane.b32.xlu0 %v1394, 17
  %v1441 = vpop.permute.xlu0 %1440
  %1442 = vrot.lane.b32.xlu0 %v1395, 17
  %v1443 = vpop.permute.xlu0 %1442
  %v1444 = vsel %vm148, %v1441, %v1443
  %v1445 = vsel %vm148, %v1439, %v1441
  %v1446 = vsel %vm148, %v1437, %v1439
  %v1447 = vsel %vm148, %v1435, %v1437
  %v1448 = vsel %vm148, %v1433, %v1435
  %v1449 = vsel %vm148, %v1443, %v1433
  %1450 = vrot.lane.b32.xlu0 %v1390, 1
  %v1451 = vpop.permute.xlu0 %1450
  %1452 = vrot.lane.b32.xlu0 %v1391, 1
  %v1453 = vpop.permute.xlu0 %1452
  %1454 = vrot.lane.b32.xlu0 %v1392, 1
  %v1455 = vpop.permute.xlu0 %1454
  %1456 = vrot.lane.b32.xlu0 %v1393, 1
  %v1457 = vpop.permute.xlu0 %1456
  %1458 = vrot.lane.b32.xlu0 %v1394, 1
  %v1459 = vpop.permute.xlu0 %1458
  %1460 = vrot.lane.b32.xlu0 %v1395, 1
  %v1461 = vpop.permute.xlu0 %1460
  %v1462 = vsel %vm184, %v1459, %v1461
  %v1463 = vsel %vm184, %v1457, %v1459
  %v1464 = vsel %vm184, %v1455, %v1457
  %v1465 = vsel %vm184, %v1453, %v1455
  %v1466 = vsel %vm184, %v1451, %v1453
  %v1467 = vsel %vm184, %v1461, %v1451
  %1468 = vrot.lane.b32.xlu0 %v1390, 127
  %v1469 = vpop.permute.xlu0 %1468
  %1470 = vrot.lane.b32.xlu0 %v1391, 127
  %v1471 = vpop.permute.xlu0 %1470
  %1472 = vrot.lane.b32.xlu0 %v1392, 127
  %v1473 = vpop.permute.xlu0 %1472
  %1474 = vrot.lane.b32.xlu0 %v1393, 127
  %v1475 = vpop.permute.xlu0 %1474
  %1476 = vrot.lane.b32.xlu0 %v1394, 127
  %v1477 = vpop.permute.xlu0 %1476
  %1478 = vrot.lane.b32.xlu0 %v1395, 127
  %v1479 = vpop.permute.xlu0 %1478
  %v1480 = vsel %vm220, %v1477, %v1479
  %v1481 = vsel %vm220, %v1475, %v1477
  %v1482 = vsel %vm220, %v1473, %v1475
  %v1483 = vsel %vm220, %v1471, %v1473
  %v1484 = vsel %vm220, %v1469, %v1471
  %v1485 = vsel %vm220, %v1479, %v1469
  %1486 = vrot.lane.b32.xlu0 %v1390, 111
  %v1487 = vpop.permute.xlu0 %1486
  %1488 = vrot.lane.b32.xlu0 %v1391, 111
  %v1489 = vpop.permute.xlu0 %1488
  %1490 = vrot.lane.b32.xlu0 %v1392, 111
  %v1491 = vpop.permute.xlu0 %1490
  %1492 = vrot.lane.b32.xlu0 %v1393, 111
  %v1493 = vpop.permute.xlu0 %1492
  %1494 = vrot.lane.b32.xlu0 %v1394, 111
  %v1495 = vpop.permute.xlu0 %1494
  %1496 = vrot.lane.b32.xlu0 %v1395, 111
  %v1497 = vpop.permute.xlu0 %1496
  %v1498 = vsel %vm256, %v1495, %v1497
  %v1499 = vsel %vm256, %v1493, %v1495
  %v1500 = vsel %vm256, %v1491, %v1493
  %v1501 = vsel %vm256, %v1489, %v1491
  %v1502 = vsel %vm256, %v1487, %v1489
  %v1503 = vsel %vm256, %v1497, %v1487
  %1504 = vrot.lane.b32.xlu0 %v1390, 110
  %v1505 = vpop.permute.xlu0 %1504
  %1506 = vrot.lane.b32.xlu0 %v1391, 110
  %v1507 = vpop.permute.xlu0 %1506
  %1508 = vrot.lane.b32.xlu0 %v1392, 110
  %v1509 = vpop.permute.xlu0 %1508
  %1510 = vrot.lane.b32.xlu0 %v1393, 110
  %v1511 = vpop.permute.xlu0 %1510
  %1512 = vrot.lane.b32.xlu0 %v1394, 110
  %v1513 = vpop.permute.xlu0 %1512
  %1514 = vrot.lane.b32.xlu0 %v1395, 110
  %v1515 = vpop.permute.xlu0 %1514
  %v1516 = vsel %vm292, %v1513, %v1515
  %v1517 = vsel %vm292, %v1511, %v1513
  %v1518 = vsel %vm292, %v1509, %v1511
  %v1519 = vsel %vm292, %v1507, %v1509
  %v1520 = vsel %vm292, %v1505, %v1507
  %v1521 = vsel %vm292, %v1515, %v1505
  %1522 = vrot.lane.b32.xlu0 %v1390, 109
  %v1523 = vpop.permute.xlu0 %1522
  %1524 = vrot.lane.b32.xlu0 %v1391, 109
  %v1525 = vpop.permute.xlu0 %1524
  %1526 = vrot.lane.b32.xlu0 %v1392, 109
  %v1527 = vpop.permute.xlu0 %1526
  %1528 = vrot.lane.b32.xlu0 %v1393, 109
  %v1529 = vpop.permute.xlu0 %1528
  %1530 = vrot.lane.b32.xlu0 %v1394, 109
  %v1531 = vpop.permute.xlu0 %1530
  %1532 = vrot.lane.b32.xlu0 %v1395, 109
  %v1533 = vpop.permute.xlu0 %1532
  %v1534 = vsel %vm328, %v1531, %v1533
  %v1535 = vsel %vm328, %v1529, %v1531
  %v1536 = vsel %vm328, %v1527, %v1529
  %v1537 = vsel %vm328, %v1525, %v1527
  %v1538 = vsel %vm328, %v1523, %v1525
  %v1539 = vsel %vm328, %v1533, %v1523
  %v1540 = vpack.c.bf16 %v1431, %v1413
  %v1541 = vpack.c.bf16 %v1430, %v1412
  %v1542 = vpack.c.bf16 %v1429, %v1411
  %v1543 = vpack.c.bf16 %v1428, %v1410
  %v1544 = vpack.c.bf16 %v1427, %v1409
  %v1545 = vpack.c.bf16 %v1426, %v1408
  %v1546 = vpack.c.bf16 %v1467, %v1449
  %v1547 = vpack.c.bf16 %v1466, %v1448
  %v1548 = vpack.c.bf16 %v1465, %v1447
  %v1549 = vpack.c.bf16 %v1464, %v1446
  %v1550 = vpack.c.bf16 %v1463, %v1445
  %v1551 = vpack.c.bf16 %v1462, %v1444
  %v1552 = vpack.c.bf16 %v1484, %v1390
  %v1553 = vpack.c.bf16 %v1483, %v1391
  %v1554 = vpack.c.bf16 %v1482, %v1392
  %v1555 = vpack.c.bf16 %v1481, %v1393
  %v1556 = vpack.c.bf16 %v1480, %v1394
  %v1557 = vpack.c.bf16 %v1485, %v1395
  %v1558 = vpack.c.bf16 %v1520, %v1502
  %v1559 = vpack.c.bf16 %v1519, %v1501
  %v1560 = vpack.c.bf16 %v1518, %v1500
  %v1561 = vpack.c.bf16 %v1517, %v1499
  %v1562 = vpack.c.bf16 %v1516, %v1498
  %v1563 = vpack.c.bf16 %v1521, %v1503
  %v1564 = vpack.c.bf16 %v1538, %v1538
  %v1565 = vpack.c.bf16 %v1537, %v1537
  %v1566 = vpack.c.bf16 %v1536, %v1536
  %v1567 = vpack.c.bf16 %v1535, %v1535
  %v1568 = vpack.c.bf16 %v1534, %v1534
  %v1569 = vpack.c.bf16 %v1539, %v1539
  %v1570 = vld [vmem:[%s7] sm:$0xf]
  %v1572 = vsel %vm835, %v1570, 0
  %v1575 = vsel %vm424, %v1564, 0
  %v1578 = vsel %vm424, %v1565, 0
  %v1581 = vsel %vm424, %v1566, 0
  %v1584 = vsel %vm424, %v1567, 0
  %v1587 = vsel %vm424, %v1568, 0
  %v1590 = vsel %vm424, %v1569, 0
  %1592 = vmatpush.bf16.msra.mxu0 0
  %1593 = vmatpush.bf16.msra.mxu0 0
  %1594 = vmatpush.bf16.msra.mxu0 0
  %1595 = vmatpush.bf16.msra.mxu0 %v1575
  %1596 = vmatpush.bf16.msra.mxu0 %v1558
  %1597 = vmatpush.bf16.msra.mxu0 %v1552
  %1598 = vmatpush.bf16.msra.mxu0 %v1546
  %1599 = vmatpush.bf16.msra.mxu0 %v1540
  %1600 = vmatmul.bf16.gmra.mxu0 %v1572
  %v1601 = vpop.f32.mrf.mxu0
  %v1602 = vadd.f32 0.0, %v1601
  %v1603 = vpop.f32.mrf.mxu0
  %1604 = vdwg.mxu0
  %1605 = vmatpush.bf16.msra.mxu0 0
  %1606 = vmatpush.bf16.msra.mxu0 0
  %1607 = vmatpush.bf16.msra.mxu0 0
  %1608 = vmatpush.bf16.msra.mxu0 %v1578
  %1609 = vmatpush.bf16.msra.mxu0 %v1559
  %1610 = vmatpush.bf16.msra.mxu0 %v1553
  %1611 = vmatpush.bf16.msra.mxu0 %v1547
  %1612 = vmatpush.bf16.msra.mxu0 %v1541
  %1613 = vmatmul.bf16.gmra.mxu0 %v1572
  %v1614 = vpop.f32.mrf.mxu0
  %v1615 = vadd.f32 0.0, %v1614
  %v1616 = vpop.f32.mrf.mxu0
  %1617 = vdwg.mxu0
  %1618 = vmatpush.bf16.msra.mxu0 0
  %1619 = vmatpush.bf16.msra.mxu0 0
  %1620 = vmatpush.bf16.msra.mxu0 0
  %1621 = vmatpush.bf16.msra.mxu0 %v1581
  %1622 = vmatpush.bf16.msra.mxu0 %v1560
  %1623 = vmatpush.bf16.msra.mxu0 %v1554
  %1624 = vmatpush.bf16.msra.mxu0 %v1548
  %1625 = vmatpush.bf16.msra.mxu0 %v1542
  %1626 = vmatmul.bf16.gmra.mxu0 %v1572
  %v1627 = vpop.f32.mrf.mxu0
  %v1628 = vadd.f32 0.0, %v1627
  %v1629 = vpop.f32.mrf.mxu0
  %1630 = vdwg.mxu0
  %1631 = vmatpush.bf16.msra.mxu0 0
  %1632 = vmatpush.bf16.msra.mxu0 0
  %1633 = vmatpush.bf16.msra.mxu0 0
  %1634 = vmatpush.bf16.msra.mxu0 %v1584
  %1635 = vmatpush.bf16.msra.mxu0 %v1561
  %1636 = vmatpush.bf16.msra.mxu0 %v1555
  %1637 = vmatpush.bf16.msra.mxu0 %v1549
  %1638 = vmatpush.bf16.msra.mxu0 %v1543
  %1639 = vmatmul.bf16.gmra.mxu0 %v1572
  %v1640 = vpop.f32.mrf.mxu0
  %v1641 = vadd.f32 0.0, %v1640
  %v1642 = vpop.f32.mrf.mxu0
  %1643 = vdwg.mxu0
  %1644 = vmatpush.bf16.msra.mxu0 0
  %1645 = vmatpush.bf16.msra.mxu0 0
  %1646 = vmatpush.bf16.msra.mxu0 0
  %1647 = vmatpush.bf16.msra.mxu0 %v1587
  %1648 = vmatpush.bf16.msra.mxu0 %v1562
  %1649 = vmatpush.bf16.msra.mxu0 %v1556
  %1650 = vmatpush.bf16.msra.mxu0 %v1550
  %1651 = vmatpush.bf16.msra.mxu0 %v1544
  %1652 = vmatmul.bf16.gmra.mxu0 %v1572
  %v1653 = vpop.f32.mrf.mxu0
  %v1654 = vadd.f32 0.0, %v1653
  %v1655 = vpop.f32.mrf.mxu0
  %1656 = vdwg.mxu0
  %1657 = vmatpush.bf16.msra.mxu0 0
  %1658 = vmatpush.bf16.msra.mxu0 0
  %1659 = vmatpush.bf16.msra.mxu0 0
  %1660 = vmatpush.bf16.msra.mxu0 %v1590
  %1661 = vmatpush.bf16.msra.mxu0 %v1563
  %1662 = vmatpush.bf16.msra.mxu0 %v1557
  %1663 = vmatpush.bf16.msra.mxu0 %v1551
  %1664 = vmatpush.bf16.msra.mxu0 %v1545
  %1665 = vmatmul.bf16.gmra.mxu0 %v1572
  %v1666 = vpop.f32.mrf.mxu0
  %v1667 = vadd.f32 0.0, %v1666
  %v1668 = vpop.f32.mrf.mxu0
  %1669 = vdwg.mxu0
  %v1670 = vmul.f32 %v1602, %v570
  %v1671 = vmul.f32 %v1615, %v571
  %v1672 = vmul.f32 %v1628, %v572
  %v1673 = vmul.f32 %v1641, %v573
  %v1674 = vmul.f32 %v1654, %v574
  %v1675 = vmul.f32 %v1667, %v575
  %v1676 = vadd.f32 %v1670, %v1671
  %v1677 = vadd.f32 %v1676, %v1672
  %v1678 = vadd.f32 %v1677, %v1673
  %v1679 = vadd.f32 %v1678, %v1674
  %v1680 = vadd.f32 %v1679, %v1675
  %1681 = vadd.xlane.f32.xlu0 %v1680
  %v1682 = vpop.xlane.xlu0 %1681
  %v1683 = vmul.f32 %v1682, 0.001953125
  %v1684 = vmul.f32 %v1670, %v1602
  %v1685 = vmul.f32 %v1671, %v1615
  %v1686 = vmul.f32 %v1672, %v1628
  %v1687 = vmul.f32 %v1673, %v1641
  %v1688 = vmul.f32 %v1674, %v1654
  %v1689 = vmul.f32 %v1675, %v1667
  %v1690 = vadd.f32 %v1684, %v1685
  %v1691 = vadd.f32 %v1690, %v1686
  %v1692 = vadd.f32 %v1691, %v1687
  %v1693 = vadd.f32 %v1692, %v1688
  %v1694 = vadd.f32 %v1693, %v1689
  %1695 = vadd.xlane.f32.xlu0 %v1694
  %v1696 = vpop.xlane.xlu0 %1695
  %v1697 = vmul.f32 %v1696, 0.001953125
  %v1698 = vmul.f32 %v1683, %v1683
  %v1699 = vsub.f32 %v1697, %v1698
  %v1700 = vadd.f32 %v1699, 1e-05
  %v1701 = vrsqrt.pop %v1700
  %v1702 = vmul.f32 %v1701, %v1700
  %v1703 = vmul.f32 %v1702, %v1701
  %v1704 = vmul.f32 0.5, %v1703
  %v1705 = vsub.f32 1.5, %v1704
  %v1706 = vmul.f32 %v1701, %v1705
  %vm1707 = vweird.f32 %v1700
  %vm1708 = vweird.f32 %v1701
  %vm1709 = vmor %vm1707, %vm1708
  %v1710 = vsel %vm1709, %v1701, %v1706
  %v1711 = vmul.f32 %v1042, %v1710
  %v1712 = vmul.f32 %v1683, %v1711
  %v1713 = vsub.f32 %v1043, %v1712
  %1715 = vset.pattern.permute.xlu0 0
  %1716 = vperm.xlu0 %1715, %v1711
  %v1717 = vpop.permute.xlu0 %1716
  %v1719 = vmul.f32 %v1602, %v1717
  %v1720 = vmul.f32 %v1615, %v1717
  %v1721 = vmul.f32 %v1628, %v1717
  %v1722 = vmul.f32 %v1641, %v1717
  %v1723 = vmul.f32 %v1654, %v1717
  %v1724 = vmul.f32 %v1667, %v1717
  %1726 = vset.pattern.permute.xlu0 0
  %1727 = vperm.xlu0 %1726, %v1713
  %v1728 = vpop.permute.xlu0 %1727
  %v1730 = vadd.f32 %v1719, %v1728
  %v1731 = vadd.f32 %v1720, %v1728
  %v1732 = vadd.f32 %v1721, %v1728
  %v1733 = vadd.f32 %v1722, %v1728
  %v1734 = vadd.f32 %v1723, %v1728
  %v1735 = vadd.f32 %v1724, %v1728
  %v1736 = vadd.f32 %v1730, %v1036
  %v1737 = vadd.f32 %v1731, %v1037
  %v1738 = vadd.f32 %v1732, %v1038
  %v1739 = vadd.f32 %v1733, %v1039
  %v1740 = vadd.f32 %v1734, %v1040
  %v1741 = vadd.f32 %v1735, %v1041
  %v1742 = vmax.f32 %v1736, 0.0
  %v1743 = vmax.f32 %v1737, 0.0
  %v1744 = vmax.f32 %v1738, 0.0
  %v1745 = vmax.f32 %v1739, 0.0
  %v1746 = vmax.f32 %v1740, 0.0
  %v1747 = vmax.f32 %v1741, 0.0
  %v1748 = vmul.f32 %v1742, %v570
  %v1749 = vmul.f32 %v1743, %v571
  %v1750 = vmul.f32 %v1744, %v572
  %v1751 = vmul.f32 %v1745, %v573
  %v1752 = vmul.f32 %v1746, %v574
  %v1753 = vmul.f32 %v1747, %v575
  %1754 = vst [vmem:[%s10] sm:$0xff] %v1748
  %1755 = vst [vmem:[%s10 + $0x8] sm:$0xff] %v1749
  %1756 = vst [vmem:[%s10 + $0x10] sm:$0xff] %v1750
  %1757 = vst [vmem:[%s10 + $0x18] sm:$0xff] %v1751
  %1758 = vst [vmem:[%s10 + $0x20] sm:$0xff] %v1752
  %1759 = vst [vmem:[%s10 + $0x28] sm:$0xff] %v1753
  // Predicated region
  $region42: #{residual_stack.1} parent=0 // pred_check
    _
  $region43: #{residual_stack.1} parent=0 // pred_check_branch
    %1761 = sbr.rel (0) target = $region45
  $region44: #{residual_stack.1} parent=0 // pred_region
    _
  $region45: #{residual_stack.1} parent=0 // pred_fallthru
    _
  // Predicated region
  $region46: #{residual_stack.1} parent=0 // pred_check
    _
  $region47: #{residual_stack.1} parent=0 // pred_check_branch
    %1763 = sbr.rel (0) target = $region49
  $region48: #{residual_stack.1} parent=0 // pred_region
    _
  $region49: #{residual_stack.1} parent=0 // pred_fallthru
    _

</llo_original>
